<compile_context>
chip_gen: v7x
topology: tpu7x:2x2x1
jax: 0.10.0
libtpu: 0.0.40
codegen_flags: <defaults>
</compile_context>

<pallas_src>
import functools
import math

import jax
import jax.numpy as jnp
from jax.experimental import pallas as pl
from jax.experimental.pallas import tpu as pltpu


def _layer_norm(x, gamma, beta, eps=1e-5):
    mu = jnp.mean(x, axis=-1, keepdims=True)
    var = jnp.mean((x - mu) ** 2, axis=-1, keepdims=True)
    return (x - mu) * jax.lax.rsqrt(var + eps) * gamma + beta


def _encoder_layer_kernel(x_ref, mask_ref,
                          wq_ref, wk_ref, wv_ref, bq_ref, bk_ref, bv_ref,
                          wo_ref, bo_ref, wf1_ref, bf1_ref, wf2_ref, bf2_ref,
                          g0_ref, be0_ref, g1_ref, be1_ref,
                          o_ref,
                          qh_sc, kh_sc, vh_sc, attn_sc,
                          *, num_heads, score_scale):
    H = num_heads
    x = x_ref[...].astype(jnp.float32)                       # (M, E), M = S*B
    M, E = x.shape
    HD = E // H

    # ---- pre-norm 0 (f32 statistics) ----
    xn = _layer_norm(x, g0_ref[...], be0_ref[...])
    xn_c = xn.astype(wq_ref.dtype)                           # bf16 MXU operand

    # ---- q/k/v projections over the batch-folded row dimension ----
    q = (jnp.dot(xn_c, wq_ref[...], preferred_element_type=jnp.float32)
         + bq_ref[...]) * score_scale                        # HD**-0.5 / sqrt(S) folded in
    k = jnp.dot(xn_c, wk_ref[...], preferred_element_type=jnp.float32) + bk_ref[...]
    v = jnp.dot(xn_c, wv_ref[...], preferred_element_type=jnp.float32) + bv_ref[...]

    # ---- regroup lanes into heads: (M, E) -> (H, M, HD) VMEM scratch ----
    for h in range(H):
        sl = slice(h * HD, (h + 1) * HD)
        qh_sc[h] = q[:, sl].astype(qh_sc.dtype)
        kh_sc[h] = k[:, sl].astype(kh_sc.dtype)
        vh_sc[h] = v[:, sl].astype(vh_sc.dtype)

    # ---- attention: all heads at once; additive mask kills cross-batch pairs ----
    scores = jnp.einsum('hqd,hkd->hqk', qh_sc[...], kh_sc[...],
                        preferred_element_type=jnp.float32)  # (H, M, M) f32
    scores = scores + mask_ref[...]                          # (M, M) broadcasts over H
    scores = scores - jnp.max(scores, axis=-1, keepdims=True)
    p = jnp.exp(scores)
    p = p * pl.reciprocal(jnp.sum(p, axis=-1, keepdims=True), approx=True)

    attn = jnp.einsum('hqk,hkd->hqd', p.astype(vh_sc.dtype), vh_sc[...],
                      preferred_element_type=jnp.float32)    # (H, M, HD) f32

    # heads back side by side along lanes via scratch slice writes (no concat)
    for h in range(H):
        attn_sc[:, h * HD:(h + 1) * HD] = attn[h].astype(attn_sc.dtype)

    # ---- out projection + residual (no post-norm in pre-norm configuration) ----
    attn_o = jnp.dot(attn_sc[...], wo_ref[...],
                     preferred_element_type=jnp.float32) + bo_ref[...]
    x1 = x + attn_o

    # ---- feed-forward block (pre-norm 1, residual) ----
    xn1 = _layer_norm(x1, g1_ref[...], be1_ref[...])
    h1 = jnp.dot(xn1.astype(wf1_ref.dtype), wf1_ref[...],
                 preferred_element_type=jnp.float32) + bf1_ref[...]
    h1 = jnp.maximum(h1, 0.0)                                # ReLU
    ff = jnp.dot(h1.astype(wf2_ref.dtype), wf2_ref[...],
                 preferred_element_type=jnp.float32) + bf2_ref[...]

    o_ref[...] = (x1 + ff).astype(o_ref.dtype)


def transformer_encoder_layer(x_sbe, params, num_heads):
    """x_sbe: (seq_len, batch, embed_dim). Returns the same shape."""
    S, B, E = x_sbe.shape
    H = num_heads
    assert E % H == 0, "embed_dim must be divisible by num_heads"
    HD = E // H
    M = S * B

    (w_in, b_in, w_out, b_out, w_f1, b_f1, w_f2, b_f2, g0, be0, g1, be1) = params

    # Batch folded into the matmul M dimension. (S,B,E)->(S*B,E) is a free,
    # contiguous reshape -- rows are s-major with b = row % B.
    x2d = x_sbe.reshape(M, E)

    cdt = jnp.bfloat16  # MXU operand dtype (f32 accumulation inside the kernel)

    # Split fused in-projection into separate q/k/v weights, pre-transposed.
    wq = w_in[:E].T.astype(cdt)                      # (E, E)
    wk = w_in[E:2 * E].T.astype(cdt)
    wv = w_in[2 * E:].T.astype(cdt)
    bq2 = b_in[:E].reshape(1, E).astype(jnp.float32)
    bk2 = b_in[E:2 * E].reshape(1, E).astype(jnp.float32)
    bv2 = b_in[2 * E:].reshape(1, E).astype(jnp.float32)
    wo_t = w_out.T.astype(cdt)                       # (E, E)
    bo2 = b_out.reshape(1, E).astype(jnp.float32)
    F_ = w_f1.shape[0]                               # FFN hidden (== E in this module)
    wf1_t = w_f1.T.astype(cdt)                       # (E, F_)
    bf1_2 = b_f1.reshape(1, F_).astype(jnp.float32)
    wf2_t = w_f2.T.astype(cdt)                       # (F_, E)
    bf2_2 = b_f2.reshape(1, E).astype(jnp.float32)
    g0_2, be0_2 = g0.reshape(1, E).astype(jnp.float32), be0.reshape(1, E).astype(jnp.float32)
    g1_2, be1_2 = g1.reshape(1, E).astype(jnp.float32), be1.reshape(1, E).astype(jnp.float32)

    # Additive attention mask: queries may only attend to keys of the same batch
    # element (rows are s-major, so same batch <=> equal row index mod B).
    # attn_mask=False in the module; a causal mask could be folded in here too.
    ids = jnp.arange(M, dtype=jnp.int32)
    same_batch = (ids[:, None] % B) == (ids[None, :] % B)
    mask_bias = jnp.where(same_batch, 0.0, -1e30).astype(jnp.float32)

    # Combined score scale: head_dim**-0.5 (PyTorch scaling) * src_len**-0.5
    # (extra divide in the reference MultiheadAttention).
    score_scale = (HD ** -0.5) * (S ** -0.5)

    operands = (x2d, mask_bias, wq, wk, wv, bq2, bk2, bv2, wo_t, bo2,
                wf1_t, bf1_2, wf2_t, bf2_2, g0_2, be0_2, g1_2, be1_2)

    # VMEM budget: operands + f32 intermediates + (H, M, M) score tensors.
    est = sum(int(a.size) * a.dtype.itemsize for a in operands)
    est += M * max(E, F_) * 4 * 10
    est += H * M * M * 4 * 3
    vmem_limit = int(min(64 * 1024 * 1024, max(16 * 1024 * 1024, 2 * est)))

    kernel = functools.partial(_encoder_layer_kernel,
                               num_heads=H, score_scale=score_scale)

    out2d = pl.pallas_call(
        kernel,
        out_shape=jax.ShapeDtypeStruct((M, E), x_sbe.dtype),
        scratch_shapes=[
            pltpu.VMEM((H, M, HD), cdt),   # q heads
            pltpu.VMEM((H, M, HD), cdt),   # k heads
            pltpu.VMEM((H, M, HD), cdt),   # v heads
            pltpu.VMEM((M, E), cdt),       # attention output, heads re-packed
        ],
        compiler_params=pltpu.CompilerParams(vmem_limit_bytes=vmem_limit),
    )(*operands)

    return out2d.reshape(S, B, E)


# ----------------------- pure-JAX reference (for sanity check) -----------------------
def _reference(x_sbe, params, num_heads):
    (w_in, b_in, w_out, b_out, w_f1, b_f1, w_f2, b_f2, g0, be0, g1, be1) = params
    S, B, E = x_sbe.shape
    HD = E // num_heads

    def ln(x, g, b):
        mu = jnp.mean(x, axis=-1, keepdims=True)
        var = jnp.mean((x - mu) ** 2, axis=-1, keepdims=True)
        return (x - mu) / jnp.sqrt(var + 1e-5) * g + b

    residual = x_sbe
    xn = ln(x_sbe, g0, be0)
    qkv = xn @ w_in.T + b_in                                  # (S, B, 3E)
    q, k, v = qkv[..., :E], qkv[..., E:2 * E], qkv[..., 2 * E:]
    q = q * (HD ** -0.5)

    def split_heads(t):
        return jnp.transpose(t.reshape(S, B * num_heads, HD), (1, 0, 2))

    qh, kh, vh = split_heads(q), split_heads(k), split_heads(v)
    scores = jnp.einsum('bqd,bkd->bqk', qh, kh) / math.sqrt(S)
    p = jax.nn.softmax(scores, axis=-1)
    attn = jnp.einsum('bqk,bkd->bqd', p, vh)                  # (B*H, S, HD)
    attn = jnp.transpose(attn, (1, 0, 2)).reshape(S, B, E)
    attn = attn @ w_out.T + b_out
    x1 = residual + attn
    xn1 = ln(x1, g1, be1)
    h = jax.nn.relu(xn1 @ w_f1.T + b_f1)
    ff = h @ w_f2.T + b_f2
    return x1 + ff


def _init_params(key, embed_dim):
    E = embed_dim
    ks = jax.random.split(key, 6)
    # xavier_uniform for in_proj_weight and out_proj.weight; zero biases
    bound_in = math.sqrt(6.0 / (3 * E + E))
    w_in = jax.random.uniform(ks[0], (3 * E, E), jnp.float32, -bound_in, bound_in)
    b_in = jnp.zeros((3 * E,), jnp.float32)
    bound_o = math.sqrt(6.0 / (E + E))
    w_out = jax.random.uniform(ks[1], (E, E), jnp.float32, -bound_o, bound_o)
    b_out = jnp.zeros((E,), jnp.float32)
    # fc1 / fc2: PyTorch Linear default init U(-1/sqrt(in), 1/sqrt(in))
    bound_l = 1.0 / math.sqrt(E)
    w_f1 = jax.random.uniform(ks[2], (E, E), jnp.float32, -bound_l, bound_l)
    b_f1 = jax.random.uniform(ks[3], (E,), jnp.float32, -bound_l, bound_l)
    w_f2 = jax.random.uniform(ks[4], (E, E), jnp.float32, -bound_l, bound_l)
    b_f2 = jax.random.uniform(ks[5], (E,), jnp.float32, -bound_l, bound_l)
    # LayerNorms: gamma=1, beta=0
    g0, be0 = jnp.ones((E,), jnp.float32), jnp.zeros((E,), jnp.float32)
    g1, be1 = jnp.ones((E,), jnp.float32), jnp.zeros((E,), jnp.float32)
    return (w_in, b_in, w_out, b_out, w_f1, b_f1, w_f2, b_f2, g0, be0, g1, be1)


if __name__ == "__main__":
    SEQ, BATCH, EMBED, HEADS = 8, 2, 32, 4
    key = jax.random.PRNGKey(0)
    kx, kp = jax.random.split(key)
    x = jax.random.normal(kx, (SEQ, BATCH, EMBED), jnp.float32)   # (seq, batch, embed)
    params = _init_params(kp, EMBED)

    out = transformer_encoder_layer(x, params, HEADS)
    out = jax.block_until_ready(out)

    ref = _reference(x, params, HEADS)
    assert out.shape == (SEQ, BATCH, EMBED)
    max_err = float(jnp.max(jnp.abs(out - ref)))
    # bf16 MXU operands + approximate reciprocal -> loose-but-meaningful tolerance
    assert jnp.allclose(out, ref, atol=5e-2, rtol=5e-2), f"mismatch vs reference (max abs err {max_err})"

    print("KERNEL_OK")
</pallas_src>

<mosaic_0001>
module attributes {stable_mosaic.version = 11 : i64} {
  func.func @_encoder_layer_kernel(%arg0: memref<16x32xf32, #tpu.memory_space<vmem>>, %arg1: memref<16x16xf32, #tpu.memory_space<vmem>>, %arg2: memref<32x32xbf16, #tpu.memory_space<vmem>>, %arg3: memref<32x32xbf16, #tpu.memory_space<vmem>>, %arg4: memref<32x32xbf16, #tpu.memory_space<vmem>>, %arg5: memref<1x32xf32, #tpu.memory_space<vmem>>, %arg6: memref<1x32xf32, #tpu.memory_space<vmem>>, %arg7: memref<1x32xf32, #tpu.memory_space<vmem>>, %arg8: memref<32x32xbf16, #tpu.memory_space<vmem>>, %arg9: memref<1x32xf32, #tpu.memory_space<vmem>>, %arg10: memref<32x32xbf16, #tpu.memory_space<vmem>>, %arg11: memref<1x32xf32, #tpu.memory_space<vmem>>, %arg12: memref<32x32xbf16, #tpu.memory_space<vmem>>, %arg13: memref<1x32xf32, #tpu.memory_space<vmem>>, %arg14: memref<1x32xf32, #tpu.memory_space<vmem>>, %arg15: memref<1x32xf32, #tpu.memory_space<vmem>>, %arg16: memref<1x32xf32, #tpu.memory_space<vmem>>, %arg17: memref<1x32xf32, #tpu.memory_space<vmem>>, %arg18: memref<16x32xf32, #tpu.memory_space<vmem>>, %arg19: memref<4x16x8xbf16, #tpu.memory_space<vmem>>, %arg20: memref<4x16x8xbf16, #tpu.memory_space<vmem>>, %arg21: memref<4x16x8xbf16, #tpu.memory_space<vmem>>, %arg22: memref<16x32xbf16, #tpu.memory_space<vmem>>) attributes {dimension_semantics = [], scalar_prefetch = 0 : i64, scratch_operands = 4 : i64, tpu.core_type = #tpu.core_type<tc>} {
    %c0 = arith.constant 0 : index
    %c0_0 = arith.constant 0 : index
    %0 = vector.load %arg0[%c0, %c0_0] : memref<16x32xf32, #tpu.memory_space<vmem>>, vector<16x32xf32>
    %c0_1 = arith.constant 0 : index
    %c0_2 = arith.constant 0 : index
    %1 = vector.load %arg14[%c0_1, %c0_2] : memref<1x32xf32, #tpu.memory_space<vmem>>, vector<1x32xf32>
    %c0_3 = arith.constant 0 : index
    %c0_4 = arith.constant 0 : index
    %2 = vector.load %arg15[%c0_3, %c0_4] : memref<1x32xf32, #tpu.memory_space<vmem>>, vector<1x32xf32>
    %cst = arith.constant dense<0.000000e+00> : vector<16xf32>
    %3 = vector.multi_reduction <add>, %0, %cst [1] : vector<16x32xf32> to vector<16xf32>
    %4 = vector.shape_cast %3 : vector<16xf32> to vector<16x1xf32>
    %cst_5 = arith.constant 3.200000e+01 : f32
    %5 = vector.broadcast %cst_5 : f32 to vector<16x1xf32>
    %6 = arith.divf %4, %5 : vector<16x1xf32>
    %7 = vector.broadcast %6 : vector<16x1xf32> to vector<16x32xf32>
    %8 = arith.subf %0, %7 : vector<16x32xf32>
    %9 = arith.mulf %8, %8 : vector<16x32xf32>
    %cst_6 = arith.constant dense<0.000000e+00> : vector<16xf32>
    %10 = vector.multi_reduction <add>, %9, %cst_6 [1] : vector<16x32xf32> to vector<16xf32>
    %11 = vector.shape_cast %10 : vector<16xf32> to vector<16x1xf32>
    %cst_7 = arith.constant 3.200000e+01 : f32
    %12 = vector.broadcast %cst_7 : f32 to vector<16x1xf32>
    %13 = arith.divf %11, %12 : vector<16x1xf32>
    %14 = vector.broadcast %6 : vector<16x1xf32> to vector<16x32xf32>
    %15 = arith.subf %0, %14 : vector<16x32xf32>
    %cst_8 = arith.constant 9.99999974E-6 : f32
    %16 = vector.broadcast %cst_8 : f32 to vector<16x1xf32>
    %17 = arith.addf %13, %16 : vector<16x1xf32>
    %18 = math.rsqrt %17 : vector<16x1xf32>
    %19 = vector.broadcast %18 : vector<16x1xf32> to vector<16x32xf32>
    %20 = arith.mulf %15, %19 : vector<16x32xf32>
    %21 = vector.broadcast %1 : vector<1x32xf32> to vector<16x32xf32>
    %22 = arith.mulf %20, %21 : vector<16x32xf32>
    %23 = vector.broadcast %2 : vector<1x32xf32> to vector<16x32xf32>
    %24 = arith.addf %22, %23 : vector<16x32xf32>
    %25 = arith.truncf %24 : vector<16x32xf32> to vector<16x32xbf16>
    %c0_9 = arith.constant 0 : index
    %c0_10 = arith.constant 0 : index
    %26 = vector.load %arg2[%c0_9, %c0_10] : memref<32x32xbf16, #tpu.memory_space<vmem>>, vector<32x32xbf16>
    %cst_11 = arith.constant dense<0.000000e+00> : vector<16x32xf32>
    %27 = tpu.matmul %25, %26, %cst_11 {dimension_numbers = #tpu.dot_dimension_numbers<[1], [0], [0], [1], [0, 0, 1, 1], [], []>} : vector<16x32xbf16>, vector<32x32xbf16>, vector<16x32xf32> -> vector<16x32xf32>
    %c0_12 = arith.constant 0 : index
    %c0_13 = arith.constant 0 : index
    %28 = vector.load %arg5[%c0_12, %c0_13] : memref<1x32xf32, #tpu.memory_space<vmem>>, vector<1x32xf32>
    %29 = vector.broadcast %28 : vector<1x32xf32> to vector<16x32xf32>
    %30 = arith.addf %27, %29 : vector<16x32xf32>
    %cst_14 = arith.constant 1.250000e-01 : f32
    %31 = vector.broadcast %cst_14 : f32 to vector<16x32xf32>
    %32 = arith.mulf %30, %31 : vector<16x32xf32>
    %c0_15 = arith.constant 0 : index
    %c0_16 = arith.constant 0 : index
    %33 = vector.load %arg3[%c0_15, %c0_16] : memref<32x32xbf16, #tpu.memory_space<vmem>>, vector<32x32xbf16>
    %cst_17 = arith.constant dense<0.000000e+00> : vector<16x32xf32>
    %34 = tpu.matmul %25, %33, %cst_17 {dimension_numbers = #tpu.dot_dimension_numbers<[1], [0], [0], [1], [0, 0, 1, 1], [], []>} : vector<16x32xbf16>, vector<32x32xbf16>, vector<16x32xf32> -> vector<16x32xf32>
    %c0_18 = arith.constant 0 : index
    %c0_19 = arith.constant 0 : index
    %35 = vector.load %arg6[%c0_18, %c0_19] : memref<1x32xf32, #tpu.memory_space<vmem>>, vector<1x32xf32>
    %36 = vector.broadcast %35 : vector<1x32xf32> to vector<16x32xf32>
    %37 = arith.addf %34, %36 : vector<16x32xf32>
    %c0_20 = arith.constant 0 : index
    %c0_21 = arith.constant 0 : index
    %38 = vector.load %arg4[%c0_20, %c0_21] : memref<32x32xbf16, #tpu.memory_space<vmem>>, vector<32x32xbf16>
    %cst_22 = arith.constant dense<0.000000e+00> : vector<16x32xf32>
    %39 = tpu.matmul %25, %38, %cst_22 {dimension_numbers = #tpu.dot_dimension_numbers<[1], [0], [0], [1], [0, 0, 1, 1], [], []>} : vector<16x32xbf16>, vector<32x32xbf16>, vector<16x32xf32> -> vector<16x32xf32>
    %c0_23 = arith.constant 0 : index
    %c0_24 = arith.constant 0 : index
    %40 = vector.load %arg7[%c0_23, %c0_24] : memref<1x32xf32, #tpu.memory_space<vmem>>, vector<1x32xf32>
    %41 = vector.broadcast %40 : vector<1x32xf32> to vector<16x32xf32>
    %42 = arith.addf %39, %41 : vector<16x32xf32>
    %43 = vector.extract_strided_slice %32 {offsets = [0, 0], sizes = [16, 8], strides = [1, 1]} : vector<16x32xf32> to vector<16x8xf32>
    %44 = arith.truncf %43 : vector<16x8xf32> to vector<16x8xbf16>
    %c0_25 = arith.constant 0 : index
    %c0_26 = arith.constant 0 : index
    %c0_27 = arith.constant 0 : index
    %45 = vector.load %arg19[%c0_25, %c0_26, %c0_27] : memref<4x16x8xbf16, #tpu.memory_space<vmem>>, vector<1x16x8xbf16>
    %46 = vector.shape_cast %45 : vector<1x16x8xbf16> to vector<16x8xbf16>
    %47 = vector.shape_cast %44 : vector<16x8xbf16> to vector<1x16x8xbf16>
    tpu.vector_store %arg19[%c0_25, %c0_26, %c0_27], %47 {strides = array<i32>} : memref<4x16x8xbf16, #tpu.memory_space<vmem>>, vector<1x16x8xbf16>,
    %48 = vector.extract_strided_slice %37 {offsets = [0, 0], sizes = [16, 8], strides = [1, 1]} : vector<16x32xf32> to vector<16x8xf32>
    %49 = arith.truncf %48 : vector<16x8xf32> to vector<16x8xbf16>
    %c0_28 = arith.constant 0 : index
    %c0_29 = arith.constant 0 : index
    %c0_30 = arith.constant 0 : index
    %50 = vector.load %arg20[%c0_28, %c0_29, %c0_30] : memref<4x16x8xbf16, #tpu.memory_space<vmem>>, vector<1x16x8xbf16>
    %51 = vector.shape_cast %50 : vector<1x16x8xbf16> to vector<16x8xbf16>
    %52 = vector.shape_cast %49 : vector<16x8xbf16> to vector<1x16x8xbf16>
    tpu.vector_store %arg20[%c0_28, %c0_29, %c0_30], %52 {strides = array<i32>} : memref<4x16x8xbf16, #tpu.memory_space<vmem>>, vector<1x16x8xbf16>,
    %53 = vector.extract_strided_slice %42 {offsets = [0, 0], sizes = [16, 8], strides = [1, 1]} : vector<16x32xf32> to vector<16x8xf32>
    %54 = arith.truncf %53 : vector<16x8xf32> to vector<16x8xbf16>
    %c0_31 = arith.constant 0 : index
    %c0_32 = arith.constant 0 : index
    %c0_33 = arith.constant 0 : index
    %55 = vector.load %arg21[%c0_31, %c0_32, %c0_33] : memref<4x16x8xbf16, #tpu.memory_space<vmem>>, vector<1x16x8xbf16>
    %56 = vector.shape_cast %55 : vector<1x16x8xbf16> to vector<16x8xbf16>
    %57 = vector.shape_cast %54 : vector<16x8xbf16> to vector<1x16x8xbf16>
    tpu.vector_store %arg21[%c0_31, %c0_32, %c0_33], %57 {strides = array<i32>} : memref<4x16x8xbf16, #tpu.memory_space<vmem>>, vector<1x16x8xbf16>,
    %58 = vector.extract_strided_slice %32 {offsets = [0, 8], sizes = [16, 8], strides = [1, 1]} : vector<16x32xf32> to vector<16x8xf32>
    %59 = arith.truncf %58 : vector<16x8xf32> to vector<16x8xbf16>
    %c1 = arith.constant 1 : index
    %c0_34 = arith.constant 0 : index
    %c0_35 = arith.constant 0 : index
    %60 = vector.load %arg19[%c1, %c0_34, %c0_35] : memref<4x16x8xbf16, #tpu.memory_space<vmem>>, vector<1x16x8xbf16>
    %61 = vector.shape_cast %60 : vector<1x16x8xbf16> to vector<16x8xbf16>
    %62 = vector.shape_cast %59 : vector<16x8xbf16> to vector<1x16x8xbf16>
    tpu.vector_store %arg19[%c1, %c0_34, %c0_35], %62 {strides = array<i32>} : memref<4x16x8xbf16, #tpu.memory_space<vmem>>, vector<1x16x8xbf16>,
    %63 = vector.extract_strided_slice %37 {offsets = [0, 8], sizes = [16, 8], strides = [1, 1]} : vector<16x32xf32> to vector<16x8xf32>
    %64 = arith.truncf %63 : vector<16x8xf32> to vector<16x8xbf16>
    %c1_36 = arith.constant 1 : index
    %c0_37 = arith.constant 0 : index
    %c0_38 = arith.constant 0 : index
    %65 = vector.load %arg20[%c1_36, %c0_37, %c0_38] : memref<4x16x8xbf16, #tpu.memory_space<vmem>>, vector<1x16x8xbf16>
    %66 = vector.shape_cast %65 : vector<1x16x8xbf16> to vector<16x8xbf16>
    %67 = vector.shape_cast %64 : vector<16x8xbf16> to vector<1x16x8xbf16>
    tpu.vector_store %arg20[%c1_36, %c0_37, %c0_38], %67 {strides = array<i32>} : memref<4x16x8xbf16, #tpu.memory_space<vmem>>, vector<1x16x8xbf16>,
    %68 = vector.extract_strided_slice %42 {offsets = [0, 8], sizes = [16, 8], strides = [1, 1]} : vector<16x32xf32> to vector<16x8xf32>
    %69 = arith.truncf %68 : vector<16x8xf32> to vector<16x8xbf16>
    %c1_39 = arith.constant 1 : index
    %c0_40 = arith.constant 0 : index
    %c0_41 = arith.constant 0 : index
    %70 = vector.load %arg21[%c1_39, %c0_40, %c0_41] : memref<4x16x8xbf16, #tpu.memory_space<vmem>>, vector<1x16x8xbf16>
    %71 = vector.shape_cast %70 : vector<1x16x8xbf16> to vector<16x8xbf16>
    %72 = vector.shape_cast %69 : vector<16x8xbf16> to vector<1x16x8xbf16>
    tpu.vector_store %arg21[%c1_39, %c0_40, %c0_41], %72 {strides = array<i32>} : memref<4x16x8xbf16, #tpu.memory_space<vmem>>, vector<1x16x8xbf16>,
    %73 = vector.extract_strided_slice %32 {offsets = [0, 16], sizes = [16, 8], strides = [1, 1]} : vector<16x32xf32> to vector<16x8xf32>
    %74 = arith.truncf %73 : vector<16x8xf32> to vector<16x8xbf16>
    %c2 = arith.constant 2 : index
    %c0_42 = arith.constant 0 : index
    %c0_43 = arith.constant 0 : index
    %75 = vector.load %arg19[%c2, %c0_42, %c0_43] : memref<4x16x8xbf16, #tpu.memory_space<vmem>>, vector<1x16x8xbf16>
    %76 = vector.shape_cast %75 : vector<1x16x8xbf16> to vector<16x8xbf16>
    %77 = vector.shape_cast %74 : vector<16x8xbf16> to vector<1x16x8xbf16>
    tpu.vector_store %arg19[%c2, %c0_42, %c0_43], %77 {strides = array<i32>} : memref<4x16x8xbf16, #tpu.memory_space<vmem>>, vector<1x16x8xbf16>,
    %78 = vector.extract_strided_slice %37 {offsets = [0, 16], sizes = [16, 8], strides = [1, 1]} : vector<16x32xf32> to vector<16x8xf32>
    %79 = arith.truncf %78 : vector<16x8xf32> to vector<16x8xbf16>
    %c2_44 = arith.constant 2 : index
    %c0_45 = arith.constant 0 : index
    %c0_46 = arith.constant 0 : index
    %80 = vector.load %arg20[%c2_44, %c0_45, %c0_46] : memref<4x16x8xbf16, #tpu.memory_space<vmem>>, vector<1x16x8xbf16>
    %81 = vector.shape_cast %80 : vector<1x16x8xbf16> to vector<16x8xbf16>
    %82 = vector.shape_cast %79 : vector<16x8xbf16> to vector<1x16x8xbf16>
    tpu.vector_store %arg20[%c2_44, %c0_45, %c0_46], %82 {strides = array<i32>} : memref<4x16x8xbf16, #tpu.memory_space<vmem>>, vector<1x16x8xbf16>,
    %83 = vector.extract_strided_slice %42 {offsets = [0, 16], sizes = [16, 8], strides = [1, 1]} : vector<16x32xf32> to vector<16x8xf32>
    %84 = arith.truncf %83 : vector<16x8xf32> to vector<16x8xbf16>
    %c2_47 = arith.constant 2 : index
    %c0_48 = arith.constant 0 : index
    %c0_49 = arith.constant 0 : index
    %85 = vector.load %arg21[%c2_47, %c0_48, %c0_49] : memref<4x16x8xbf16, #tpu.memory_space<vmem>>, vector<1x16x8xbf16>
    %86 = vector.shape_cast %85 : vector<1x16x8xbf16> to vector<16x8xbf16>
    %87 = vector.shape_cast %84 : vector<16x8xbf16> to vector<1x16x8xbf16>
    tpu.vector_store %arg21[%c2_47, %c0_48, %c0_49], %87 {strides = array<i32>} : memref<4x16x8xbf16, #tpu.memory_space<vmem>>, vector<1x16x8xbf16>,
    %88 = vector.extract_strided_slice %32 {offsets = [0, 24], sizes = [16, 8], strides = [1, 1]} : vector<16x32xf32> to vector<16x8xf32>
    %89 = arith.truncf %88 : vector<16x8xf32> to vector<16x8xbf16>
    %c3 = arith.constant 3 : index
    %c0_50 = arith.constant 0 : index
    %c0_51 = arith.constant 0 : index
    %90 = vector.load %arg19[%c3, %c0_50, %c0_51] : memref<4x16x8xbf16, #tpu.memory_space<vmem>>, vector<1x16x8xbf16>
    %91 = vector.shape_cast %90 : vector<1x16x8xbf16> to vector<16x8xbf16>
    %92 = vector.shape_cast %89 : vector<16x8xbf16> to vector<1x16x8xbf16>
    tpu.vector_store %arg19[%c3, %c0_50, %c0_51], %92 {strides = array<i32>} : memref<4x16x8xbf16, #tpu.memory_space<vmem>>, vector<1x16x8xbf16>,
    %93 = vector.extract_strided_slice %37 {offsets = [0, 24], sizes = [16, 8], strides = [1, 1]} : vector<16x32xf32> to vector<16x8xf32>
    %94 = arith.truncf %93 : vector<16x8xf32> to vector<16x8xbf16>
    %c3_52 = arith.constant 3 : index
    %c0_53 = arith.constant 0 : index
    %c0_54 = arith.constant 0 : index
    %95 = vector.load %arg20[%c3_52, %c0_53, %c0_54] : memref<4x16x8xbf16, #tpu.memory_space<vmem>>, vector<1x16x8xbf16>
    %96 = vector.shape_cast %95 : vector<1x16x8xbf16> to vector<16x8xbf16>
    %97 = vector.shape_cast %94 : vector<16x8xbf16> to vector<1x16x8xbf16>
    tpu.vector_store %arg20[%c3_52, %c0_53, %c0_54], %97 {strides = array<i32>} : memref<4x16x8xbf16, #tpu.memory_space<vmem>>, vector<1x16x8xbf16>,
    %98 = vector.extract_strided_slice %42 {offsets = [0, 24], sizes = [16, 8], strides = [1, 1]} : vector<16x32xf32> to vector<16x8xf32>
    %99 = arith.truncf %98 : vector<16x8xf32> to vector<16x8xbf16>
    %c3_55 = arith.constant 3 : index
    %c0_56 = arith.constant 0 : index
    %c0_57 = arith.constant 0 : index
    %100 = vector.load %arg21[%c3_55, %c0_56, %c0_57] : memref<4x16x8xbf16, #tpu.memory_space<vmem>>, vector<1x16x8xbf16>
    %101 = vector.shape_cast %100 : vector<1x16x8xbf16> to vector<16x8xbf16>
    %102 = vector.shape_cast %99 : vector<16x8xbf16> to vector<1x16x8xbf16>
    tpu.vector_store %arg21[%c3_55, %c0_56, %c0_57], %102 {strides = array<i32>} : memref<4x16x8xbf16, #tpu.memory_space<vmem>>, vector<1x16x8xbf16>,
    %c0_58 = arith.constant 0 : index
    %c0_59 = arith.constant 0 : index
    %c0_60 = arith.constant 0 : index
    %103 = vector.load %arg19[%c0_58, %c0_59, %c0_60] : memref<4x16x8xbf16, #tpu.memory_space<vmem>>, vector<4x16x8xbf16>
    %c0_61 = arith.constant 0 : index
    %c0_62 = arith.constant 0 : index
    %c0_63 = arith.constant 0 : index
    %104 = vector.load %arg20[%c0_61, %c0_62, %c0_63] : memref<4x16x8xbf16, #tpu.memory_space<vmem>>, vector<4x16x8xbf16>
    "tpu.trace_start"() <{level = 10 : i32, message = "hqd,hkd->hqk"}> : () -> ()
    %cst_64 = arith.constant dense<0.000000e+00> : vector<4x16x16xf32>
    %105 = tpu.matmul %103, %104, %cst_64 {dimension_numbers = #tpu.dot_dimension_numbers<[2], [2], [1], [1], [0, 0, 0, 1, 1, 1], [0], [0]>} : vector<4x16x8xbf16>, vector<4x16x8xbf16>, vector<4x16x16xf32> -> vector<4x16x16xf32>
    "tpu.trace_stop"() : () -> ()
    %c0_65 = arith.constant 0 : index
    %c0_66 = arith.constant 0 : index
    %106 = vector.load %arg1[%c0_65, %c0_66] : memref<16x16xf32, #tpu.memory_space<vmem>>, vector<16x16xf32>
    %107 = vector.shape_cast %106 : vector<16x16xf32> to vector<1x16x16xf32>
    %108 = vector.broadcast %107 : vector<1x16x16xf32> to vector<4x16x16xf32>
    %109 = arith.addf %105, %108 : vector<4x16x16xf32>
    %cst_67 = arith.constant dense<0xFF800000> : vector<4x16xf32>
    %110 = vector.multi_reduction <maximumf>, %109, %cst_67 [2] : vector<4x16x16xf32> to vector<4x16xf32>
    %111 = vector.shape_cast %110 : vector<4x16xf32> to vector<4x16x1xf32>
    %112 = vector.broadcast %111 : vector<4x16x1xf32> to vector<4x16x16xf32>
    %113 = arith.subf %109, %112 : vector<4x16x16xf32>
    %114 = math.exp %113 : vector<4x16x16xf32>
    %cst_68 = arith.constant dense<0.000000e+00> : vector<4x16xf32>
    %115 = vector.multi_reduction <add>, %114, %cst_68 [2] : vector<4x16x16xf32> to vector<4x16xf32>
    %116 = vector.shape_cast %115 : vector<4x16xf32> to vector<4x16x1xf32>
    %117 = tpu.reciprocal %116 {approx = true} : vector<4x16x1xf32> -> vector<4x16x1xf32>
    %118 = vector.broadcast %117 : vector<4x16x1xf32> to vector<4x16x16xf32>
    %119 = arith.mulf %114, %118 : vector<4x16x16xf32>
    %120 = arith.truncf %119 : vector<4x16x16xf32> to vector<4x16x16xbf16>
    %c0_69 = arith.constant 0 : index
    %c0_70 = arith.constant 0 : index
    %c0_71 = arith.constant 0 : index
    %121 = vector.load %arg21[%c0_69, %c0_70, %c0_71] : memref<4x16x8xbf16, #tpu.memory_space<vmem>>, vector<4x16x8xbf16>
    "tpu.trace_start"() <{level = 10 : i32, message = "hqk,hkd->hqd"}> : () -> ()
    %cst_72 = arith.constant dense<0.000000e+00> : vector<4x16x8xf32>
    %122 = tpu.matmul %120, %121, %cst_72 {dimension_numbers = #tpu.dot_dimension_numbers<[2], [1], [1], [2], [0, 0, 0, 1, 1, 2], [0], [0]>} : vector<4x16x16xbf16>, vector<4x16x8xbf16>, vector<4x16x8xf32> -> vector<4x16x8xf32>
    "tpu.trace_stop"() : () -> ()
    %123 = vector.extract_strided_slice %122 {offsets = [0, 0, 0], sizes = [1, 16, 8], strides = [1, 1, 1]} : vector<4x16x8xf32> to vector<1x16x8xf32>
    %124 = vector.shape_cast %123 : vector<1x16x8xf32> to vector<16x8xf32>
    %125 = arith.truncf %124 : vector<16x8xf32> to vector<16x8xbf16>
    %c0_73 = arith.constant 0 : index
    %c0_74 = arith.constant 0 : index
    %126 = vector.load %arg22[%c0_73, %c0_74] : memref<16x32xbf16, #tpu.memory_space<vmem>>, vector<16x8xbf16>
    tpu.vector_store %arg22[%c0_73, %c0_74], %125 {strides = array<i32>} : memref<16x32xbf16, #tpu.memory_space<vmem>>, vector<16x8xbf16>,
    %127 = vector.extract_strided_slice %122 {offsets = [1, 0, 0], sizes = [1, 16, 8], strides = [1, 1, 1]} : vector<4x16x8xf32> to vector<1x16x8xf32>
    %128 = vector.shape_cast %127 : vector<1x16x8xf32> to vector<16x8xf32>
    %129 = arith.truncf %128 : vector<16x8xf32> to vector<16x8xbf16>
    %c0_75 = arith.constant 0 : index
    %c8 = arith.constant 8 : index
    %130 = vector.load %arg22[%c0_75, %c8] : memref<16x32xbf16, #tpu.memory_space<vmem>>, vector<16x8xbf16>
    tpu.vector_store %arg22[%c0_75, %c8], %129 {strides = array<i32>} : memref<16x32xbf16, #tpu.memory_space<vmem>>, vector<16x8xbf16>,
    %131 = vector.extract_strided_slice %122 {offsets = [2, 0, 0], sizes = [1, 16, 8], strides = [1, 1, 1]} : vector<4x16x8xf32> to vector<1x16x8xf32>
    %132 = vector.shape_cast %131 : vector<1x16x8xf32> to vector<16x8xf32>
    %133 = arith.truncf %132 : vector<16x8xf32> to vector<16x8xbf16>
    %c0_76 = arith.constant 0 : index
    %c16 = arith.constant 16 : index
    %134 = vector.load %arg22[%c0_76, %c16] : memref<16x32xbf16, #tpu.memory_space<vmem>>, vector<16x8xbf16>
    tpu.vector_store %arg22[%c0_76, %c16], %133 {strides = array<i32>} : memref<16x32xbf16, #tpu.memory_space<vmem>>, vector<16x8xbf16>,
    %135 = vector.extract_strided_slice %122 {offsets = [3, 0, 0], sizes = [1, 16, 8], strides = [1, 1, 1]} : vector<4x16x8xf32> to vector<1x16x8xf32>
    %136 = vector.shape_cast %135 : vector<1x16x8xf32> to vector<16x8xf32>
    %137 = arith.truncf %136 : vector<16x8xf32> to vector<16x8xbf16>
    %c0_77 = arith.constant 0 : index
    %c24 = arith.constant 24 : index
    %138 = vector.load %arg22[%c0_77, %c24] : memref<16x32xbf16, #tpu.memory_space<vmem>>, vector<16x8xbf16>
    tpu.vector_store %arg22[%c0_77, %c24], %137 {strides = array<i32>} : memref<16x32xbf16, #tpu.memory_space<vmem>>, vector<16x8xbf16>,
    %c0_78 = arith.constant 0 : index
    %c0_79 = arith.constant 0 : index
    %139 = vector.load %arg22[%c0_78, %c0_79] : memref<16x32xbf16, #tpu.memory_space<vmem>>, vector<16x32xbf16>
    %c0_80 = arith.constant 0 : index
    %c0_81 = arith.constant 0 : index
    %140 = vector.load %arg8[%c0_80, %c0_81] : memref<32x32xbf16, #tpu.memory_space<vmem>>, vector<32x32xbf16>
    %cst_82 = arith.constant dense<0.000000e+00> : vector<16x32xf32>
    %141 = tpu.matmul %139, %140, %cst_82 {dimension_numbers = #tpu.dot_dimension_numbers<[1], [0], [0], [1], [0, 0, 1, 1], [], []>} : vector<16x32xbf16>, vector<32x32xbf16>, vector<16x32xf32> -> vector<16x32xf32>
    %c0_83 = arith.constant 0 : index
    %c0_84 = arith.constant 0 : index
    %142 = vector.load %arg9[%c0_83, %c0_84] : memref<1x32xf32, #tpu.memory_space<vmem>>, vector<1x32xf32>
    %143 = vector.broadcast %142 : vector<1x32xf32> to vector<16x32xf32>
    %144 = arith.addf %141, %143 : vector<16x32xf32>
    %145 = arith.addf %0, %144 : vector<16x32xf32>
    %c0_85 = arith.constant 0 : index
    %c0_86 = arith.constant 0 : index
    %146 = vector.load %arg16[%c0_85, %c0_86] : memref<1x32xf32, #tpu.memory_space<vmem>>, vector<1x32xf32>
    %c0_87 = arith.constant 0 : index
    %c0_88 = arith.constant 0 : index
    %147 = vector.load %arg17[%c0_87, %c0_88] : memref<1x32xf32, #tpu.memory_space<vmem>>, vector<1x32xf32>
    %cst_89 = arith.constant dense<0.000000e+00> : vector<16xf32>
    %148 = vector.multi_reduction <add>, %145, %cst_89 [1] : vector<16x32xf32> to vector<16xf32>
    %149 = vector.shape_cast %148 : vector<16xf32> to vector<16x1xf32>
    %cst_90 = arith.constant 3.200000e+01 : f32
    %150 = vector.broadcast %cst_90 : f32 to vector<16x1xf32>
    %151 = arith.divf %149, %150 : vector<16x1xf32>
    %152 = vector.broadcast %151 : vector<16x1xf32> to vector<16x32xf32>
    %153 = arith.subf %145, %152 : vector<16x32xf32>
    %154 = arith.mulf %153, %153 : vector<16x32xf32>
    %cst_91 = arith.constant dense<0.000000e+00> : vector<16xf32>
    %155 = vector.multi_reduction <add>, %154, %cst_91 [1] : vector<16x32xf32> to vector<16xf32>
    %156 = vector.shape_cast %155 : vector<16xf32> to vector<16x1xf32>
    %cst_92 = arith.constant 3.200000e+01 : f32
    %157 = vector.broadcast %cst_92 : f32 to vector<16x1xf32>
    %158 = arith.divf %156, %157 : vector<16x1xf32>
    %159 = vector.broadcast %151 : vector<16x1xf32> to vector<16x32xf32>
    %160 = arith.subf %145, %159 : vector<16x32xf32>
    %cst_93 = arith.constant 9.99999974E-6 : f32
    %161 = vector.broadcast %cst_93 : f32 to vector<16x1xf32>
    %162 = arith.addf %158, %161 : vector<16x1xf32>
    %163 = math.rsqrt %162 : vector<16x1xf32>
    %164 = vector.broadcast %163 : vector<16x1xf32> to vector<16x32xf32>
    %165 = arith.mulf %160, %164 : vector<16x32xf32>
    %166 = vector.broadcast %146 : vector<1x32xf32> to vector<16x32xf32>
    %167 = arith.mulf %165, %166 : vector<16x32xf32>
    %168 = vector.broadcast %147 : vector<1x32xf32> to vector<16x32xf32>
    %169 = arith.addf %167, %168 : vector<16x32xf32>
    %170 = arith.truncf %169 : vector<16x32xf32> to vector<16x32xbf16>
    %c0_94 = arith.constant 0 : index
    %c0_95 = arith.constant 0 : index
    %171 = vector.load %arg10[%c0_94, %c0_95] : memref<32x32xbf16, #tpu.memory_space<vmem>>, vector<32x32xbf16>
    %cst_96 = arith.constant dense<0.000000e+00> : vector<16x32xf32>
    %172 = tpu.matmul %170, %171, %cst_96 {dimension_numbers = #tpu.dot_dimension_numbers<[1], [0], [0], [1], [0, 0, 1, 1], [], []>} : vector<16x32xbf16>, vector<32x32xbf16>, vector<16x32xf32> -> vector<16x32xf32>
    %c0_97 = arith.constant 0 : index
    %c0_98 = arith.constant 0 : index
    %173 = vector.load %arg11[%c0_97, %c0_98] : memref<1x32xf32, #tpu.memory_space<vmem>>, vector<1x32xf32>
    %174 = vector.broadcast %173 : vector<1x32xf32> to vector<16x32xf32>
    %175 = arith.addf %172, %174 : vector<16x32xf32>
    %cst_99 = arith.constant 0.000000e+00 : f32
    %176 = vector.broadcast %cst_99 : f32 to vector<16x32xf32>
    %177 = arith.maximumf %175, %176 : vector<16x32xf32>
    %178 = arith.truncf %177 : vector<16x32xf32> to vector<16x32xbf16>
    %c0_100 = arith.constant 0 : index
    %c0_101 = arith.constant 0 : index
    %179 = vector.load %arg12[%c0_100, %c0_101] : memref<32x32xbf16, #tpu.memory_space<vmem>>, vector<32x32xbf16>
    %cst_102 = arith.constant dense<0.000000e+00> : vector<16x32xf32>
    %180 = tpu.matmul %178, %179, %cst_102 {dimension_numbers = #tpu.dot_dimension_numbers<[1], [0], [0], [1], [0, 0, 1, 1], [], []>} : vector<16x32xbf16>, vector<32x32xbf16>, vector<16x32xf32> -> vector<16x32xf32>
    %c0_103 = arith.constant 0 : index
    %c0_104 = arith.constant 0 : index
    %181 = vector.load %arg13[%c0_103, %c0_104] : memref<1x32xf32, #tpu.memory_space<vmem>>, vector<1x32xf32>
    %182 = vector.broadcast %181 : vector<1x32xf32> to vector<16x32xf32>
    %183 = arith.addf %180, %182 : vector<16x32xf32>
    %184 = arith.addf %145, %183 : vector<16x32xf32>
    %c0_105 = arith.constant 0 : index
    %c0_106 = arith.constant 0 : index
    %185 = vector.load %arg18[%c0_105, %c0_106] : memref<16x32xf32, #tpu.memory_space<vmem>>, vector<16x32xf32>
    tpu.vector_store %arg18[%c0_105, %c0_106], %184 {strides = array<i32>} : memref<16x32xf32, #tpu.memory_space<vmem>>, vector<16x32xf32>,
    return
  }
}

</mosaic_0001>

<llo_original>
// kernel: tpu_custom_call.1
$region0: #{tpu_custom_call.1}
  #allocation0 [shape = 'u32[]', space=smem, size = 0x4, offset = 0x4, fixed_abs, tag = 'smem constant byte address 0x4 - core index']
  #allocation1 [shape = 'u32[144,128]{1,0:T(1,128)}', space=vmem, size = 0x12000, scoped, tag = 'internal scratch']
  #allocation2 [shape = 'bf16[4,16,8]{2,1,0:T(16,128)(2,1)}', space=vmem, size = 0x4000, scoped, tag = 'scratch operand']
  #allocation3 [shape = 'bf16[4,16,8]{2,1,0:T(16,128)(2,1)}', space=vmem, size = 0x4000, scoped, tag = 'scratch operand']
  #allocation4 [shape = 'bf16[4,16,8]{2,1,0:T(16,128)(2,1)}', space=vmem, size = 0x4000, scoped, tag = 'scratch operand']
  #allocation5 [shape = 'bf16[16,32]{1,0:T(16,128)(2,1)}', space=vmem, size = 0x1000, scoped, tag = 'scratch operand']
  %s0 = inlined_call_operand.hbm [shape: f32[16,32], index: 0, kind: input, shape index: {}]
  %s1 = inlined_call_operand.hbm [shape: f32[16,16], index: 1, kind: input, shape index: {}]
  %s2 = inlined_call_operand.hbm [shape: bf16[32,32], index: 2, kind: input, shape index: {}]
  %s3 = inlined_call_operand.hbm [shape: bf16[32,32], index: 3, kind: input, shape index: {}]
  %s4 = inlined_call_operand.hbm [shape: bf16[32,32], index: 4, kind: input, shape index: {}]
  %s5 = inlined_call_operand.vmem [shape: f32[1,32], index: 5, kind: input, shape index: {}]
  %s6 = inlined_call_operand.vmem [shape: f32[1,32], index: 6, kind: input, shape index: {}]
  %s7 = inlined_call_operand.hbm [shape: f32[1,32], index: 7, kind: input, shape index: {}]
  %s8 = inlined_call_operand.vmem [shape: bf16[32,32], index: 8, kind: input, shape index: {}]
  %s9 = inlined_call_operand.hbm [shape: f32[1,32], index: 9, kind: input, shape index: {}]
  %s10 = inlined_call_operand.vmem [shape: bf16[32,32], index: 10, kind: input, shape index: {}]
  %s11 = inlined_call_operand.vmem [shape: f32[1,32], index: 11, kind: input, shape index: {}]
  %s12 = inlined_call_operand.hbm [shape: bf16[32,32], index: 12, kind: input, shape index: {}]
  %s13 = inlined_call_operand.vmem [shape: f32[1,32], index: 13, kind: input, shape index: {}]
  %s14 = inlined_call_operand.vmem [shape: f32[1,32], index: 14, kind: input, shape index: {}]
  %s15 = inlined_call_operand.vmem [shape: f32[1,32], index: 15, kind: input, shape index: {}]
  %s16 = inlined_call_operand.vmem [shape: f32[1,32], index: 16, kind: input, shape index: {}]
  %s17 = inlined_call_operand.vmem [shape: f32[1,32], index: 17, kind: input, shape index: {}]
  %s18 = inlined_call_operand.hbm [shape: f32[16,32], index: 18, kind: output, shape index: {}]
  %s19 = sld [smem:[#allocation0]]
  $region114: #{tpu_custom_call.1} parent=0
    _
  %s21 = ssub.s32 1, %s19
  %s22 = scalar_select 0, %s21, %s19
  $region1: #{tpu_custom_call.1} parent=0
    #allocation6 [shape = 'u8[8192]{0}', space=vmem, size = 0x2000, scoped, tag = 'input window, operand 0, single buffered']
    #allocation7 [shape = 's32[1]{0}', space=sflag, size = 0x4, scoped, tag = 'scoped memory for tpu_custom_call.1']
    #allocation8 [shape = 's32[1]{0}', space=sflag, size = 0x4, scoped, tag = 'scoped memory for tpu_custom_call.1']
    #allocation9 [shape = 'u8[8192]{0}', space=vmem, size = 0x2000, scoped, tag = 'input window, operand 1, single buffered']
    #allocation10 [shape = 's32[1]{0}', space=sflag, size = 0x4, scoped, tag = 'scoped memory for tpu_custom_call.1']
    #allocation11 [shape = 'u8[8192]{0}', space=vmem, size = 0x2000, scoped, tag = 'input window, operand 2, single buffered']
    #allocation12 [shape = 'u8[8192]{0}', space=vmem, size = 0x2000, scoped, tag = 'input window, operand 3, single buffered']
    #allocation13 [shape = 's32[1]{0}', space=sflag, size = 0x4, scoped, tag = 'scoped memory for tpu_custom_call.1']
    #allocation14 [shape = 'u8[8192]{0}', space=vmem, size = 0x2000, scoped, tag = 'input window, operand 4, single buffered']
    #allocation15 [shape = 'u8[512]{0}', space=vmem, size = 0x400, scoped, tag = 'input window, operand 7, single buffered']
    #allocation16 [shape = 's32[1]{0}', space=sflag, size = 0x4, scoped, tag = 'scoped memory for tpu_custom_call.1']
    #allocation17 [shape = 'u8[512]{0}', space=vmem, size = 0x400, scoped, tag = 'input window, operand 9, single buffered']
    #allocation18 [shape = 'u8[8192]{0}', space=vmem, size = 0x2000, scoped, tag = 'input window, operand 12, single buffered']
    #allocation19 [shape = 's32[1]{0}', space=sflag, size = 0x4, scoped, tag = 'scoped memory for tpu_custom_call.1']
    #allocation20 [shape = 'u8[8192]{0}', space=vmem, size = 0x2000, scoped, tag = 'output window, operand 0, single buffered']
    %23 = vsyncpa [#allocation7], 0
    %24 = vsyncpa [#allocation10], 0
    %25 = vsyncpa [#allocation13], 0
    %26 = vsyncpa [#allocation16], 0
    %27 = vsyncpa [#allocation19], 0
    %28 = vsyncpa [#allocation8], 0
    // Predicated region
    $region2: #{tpu_custom_call.1} parent=1 // pred_check
      _
    $region3: #{tpu_custom_call.1} parent=1 // pred_check_branch
      %30 = sbr.rel (0) target = $region5
    $region4: #{tpu_custom_call.1} parent=1 // pred_region
      %s32 = ssub.s32 256, 256
      %33 = vsyncadd [#allocation7], %s32
      %s34 = sshll.u32 [#allocation6], 4
      %s35 = int_to_ptr.vmem [resolvable:$true] %s34
      %40 = dma.hbm_to_vmem [thread:$0]  %s0, 256, %s35, [#allocation7], 128, 128, 8
    $region5: #{tpu_custom_call.1} parent=1 // pred_fallthru
      _
    // Predicated region
    $region6: #{tpu_custom_call.1} parent=1 // pred_check
      _
    $region7: #{tpu_custom_call.1} parent=1 // pred_check_branch
      %42 = sbr.rel (0) target = $region9
    $region8: #{tpu_custom_call.1} parent=1 // pred_region
      %s44 = ssub.s32 256, 256
      %45 = vsyncadd [#allocation10], %s44
      %s46 = sshll.u32 [#allocation9], 4
      %s47 = int_to_ptr.vmem [resolvable:$true] %s46
      %52 = dma.hbm_to_vmem [thread:$0]  %s1, 256, %s47, [#allocation10], 128, 128, 8
    $region9: #{tpu_custom_call.1} parent=1 // pred_fallthru
      _
    // Predicated region
    $region10: #{tpu_custom_call.1} parent=1 // pred_check
      _
    $region11: #{tpu_custom_call.1} parent=1 // pred_check_branch
      %54 = sbr.rel (0) target = $region13
    $region12: #{tpu_custom_call.1} parent=1 // pred_region
      %s56 = ssub.s32 256, 256
      %57 = vsyncadd [#allocation10], %s56
      %s58 = sshll.u32 [#allocation11], 4
      %s59 = int_to_ptr.vmem [resolvable:$true] %s58
      %64 = dma.hbm_to_vmem [thread:$0]  %s2, 256, %s59, [#allocation10], 64, 64, 4
    $region13: #{tpu_custom_call.1} parent=1 // pred_fallthru
      _
    // Predicated region
    $region14: #{tpu_custom_call.1} parent=1 // pred_check
      _
    $region15: #{tpu_custom_call.1} parent=1 // pred_check_branch
      %66 = sbr.rel (0) target = $region17
    $region16: #{tpu_custom_call.1} parent=1 // pred_region
      %s68 = ssub.s32 256, 256
      %69 = vsyncadd [#allocation13], %s68
      %s70 = sshll.u32 [#allocation12], 4
      %s71 = int_to_ptr.vmem [resolvable:$true] %s70
      %76 = dma.hbm_to_vmem [thread:$0]  %s3, 256, %s71, [#allocation13], 64, 64, 4
    $region17: #{tpu_custom_call.1} parent=1 // pred_fallthru
      _
    // Predicated region
    $region18: #{tpu_custom_call.1} parent=1 // pred_check
      _
    $region19: #{tpu_custom_call.1} parent=1 // pred_check_branch
      %78 = sbr.rel (0) target = $region21
    $region20: #{tpu_custom_call.1} parent=1 // pred_region
      %s80 = ssub.s32 256, 256
      %81 = vsyncadd [#allocation13], %s80
      %s82 = sshll.u32 [#allocation14], 4
      %s83 = int_to_ptr.vmem [resolvable:$true] %s82
      %88 = dma.hbm_to_vmem [thread:$0]  %s4, 256, %s83, [#allocation13], 64, 64, 4
    $region21: #{tpu_custom_call.1} parent=1 // pred_fallthru
      _
    // Predicated region
    $region22: #{tpu_custom_call.1} parent=1 // pred_check
      _
    $region23: #{tpu_custom_call.1} parent=1 // pred_check_branch
      %90 = sbr.rel (0) target = $region25
    $region24: #{tpu_custom_call.1} parent=1 // pred_region
      _
    $region25: #{tpu_custom_call.1} parent=1 // pred_fallthru
      _
    // Predicated region
    $region26: #{tpu_custom_call.1} parent=1 // pred_check
      _
    $region27: #{tpu_custom_call.1} parent=1 // pred_check_branch
      %92 = sbr.rel (0) target = $region29
    $region28: #{tpu_custom_call.1} parent=1 // pred_region
      _
    $region29: #{tpu_custom_call.1} parent=1 // pred_fallthru
      _
    // Predicated region
    $region30: #{tpu_custom_call.1} parent=1 // pred_check
      _
    $region31: #{tpu_custom_call.1} parent=1 // pred_check_branch
      %94 = sbr.rel (0) target = $region33
    $region32: #{tpu_custom_call.1} parent=1 // pred_region
      %s96 = ssub.s32 16, 16
      %97 = vsyncadd [#allocation16], %s96
      %s99 = sshll.u32 [#allocation15], 4
      %s100 = int_to_ptr.vmem [resolvable:$true] %s99
      %102 = dma.hbm_to_vmem [thread:$0]  %s7, 16, %s100, [#allocation16]
    $region33: #{tpu_custom_call.1} parent=1 // pred_fallthru
      _
    // Predicated region
    $region34: #{tpu_custom_call.1} parent=1 // pred_check
      _
    $region35: #{tpu_custom_call.1} parent=1 // pred_check_branch
      %104 = sbr.rel (0) target = $region37
    $region36: #{tpu_custom_call.1} parent=1 // pred_region
      _
    $region37: #{tpu_custom_call.1} parent=1 // pred_fallthru
      _
    // Predicated region
    $region38: #{tpu_custom_call.1} parent=1 // pred_check
      _
    $region39: #{tpu_custom_call.1} parent=1 // pred_check_branch
      %106 = sbr.rel (0) target = $region41
    $region40: #{tpu_custom_call.1} parent=1 // pred_region
      %s108 = ssub.s32 16, 16
      %109 = vsyncadd [#allocation16], %s108
      %s111 = sshll.u32 [#allocation17], 4
      %s112 = int_to_ptr.vmem [resolvable:$true] %s111
      %114 = dma.hbm_to_vmem [thread:$0]  %s9, 16, %s112, [#allocation16]
    $region41: #{tpu_custom_call.1} parent=1 // pred_fallthru
      _
    // Predicated region
    $region42: #{tpu_custom_call.1} parent=1 // pred_check
      _
    $region43: #{tpu_custom_call.1} parent=1 // pred_check_branch
      %116 = sbr.rel (0) target = $region45
    $region44: #{tpu_custom_call.1} parent=1 // pred_region
      _
    $region45: #{tpu_custom_call.1} parent=1 // pred_fallthru
      _
    // Predicated region
    $region46: #{tpu_custom_call.1} parent=1 // pred_check
      _
    $region47: #{tpu_custom_call.1} parent=1 // pred_check_branch
      %118 = sbr.rel (0) target = $region49
    $region48: #{tpu_custom_call.1} parent=1 // pred_region
      _
    $region49: #{tpu_custom_call.1} parent=1 // pred_fallthru
      _
    // Predicated region
    $region50: #{tpu_custom_call.1} parent=1 // pred_check
      _
    $region51: #{tpu_custom_call.1} parent=1 // pred_check_branch
      %120 = sbr.rel (0) target = $region53
    $region52: #{tpu_custom_call.1} parent=1 // pred_region
      %s122 = ssub.s32 256, 256
      %123 = vsyncadd [#allocation19], %s122
      %s124 = sshll.u32 [#allocation18], 4
      %s125 = int_to_ptr.vmem [resolvable:$true] %s124
      %130 = dma.hbm_to_vmem [thread:$0]  %s12, 256, %s125, [#allocation19], 64, 64, 4
    $region53: #{tpu_custom_call.1} parent=1 // pred_fallthru
      _
    // Predicated region
    $region54: #{tpu_custom_call.1} parent=1 // pred_check
      _
    $region55: #{tpu_custom_call.1} parent=1 // pred_check_branch
      %132 = sbr.rel (0) target = $region57
    $region56: #{tpu_custom_call.1} parent=1 // pred_region
      _
    $region57: #{tpu_custom_call.1} parent=1 // pred_fallthru
      _
    // Predicated region
    $region58: #{tpu_custom_call.1} parent=1 // pred_check
      _
    $region59: #{tpu_custom_call.1} parent=1 // pred_check_branch
      %134 = sbr.rel (0) target = $region61
    $region60: #{tpu_custom_call.1} parent=1 // pred_region
      _
    $region61: #{tpu_custom_call.1} parent=1 // pred_fallthru
      _
    // Predicated region
    $region62: #{tpu_custom_call.1} parent=1 // pred_check
      _
    $region63: #{tpu_custom_call.1} parent=1 // pred_check_branch
      %136 = sbr.rel (0) target = $region65
    $region64: #{tpu_custom_call.1} parent=1 // pred_region
      _
    $region65: #{tpu_custom_call.1} parent=1 // pred_fallthru
      _
    // Predicated region
    $region66: #{tpu_custom_call.1} parent=1 // pred_check
      _
    $region67: #{tpu_custom_call.1} parent=1 // pred_check_branch
      %138 = sbr.rel (0) target = $region69
    $region68: #{tpu_custom_call.1} parent=1 // pred_region
      _
    $region69: #{tpu_custom_call.1} parent=1 // pred_fallthru
      _
    // Predicated region
    $region70: #{tpu_custom_call.1} parent=1 // pred_check
      _
    $region71: #{tpu_custom_call.1} parent=1 // pred_check_branch
      %140 = sbr.rel (0) target = $region73
    $region72: #{tpu_custom_call.1} parent=1 // pred_region
      _
    $region73: #{tpu_custom_call.1} parent=1 // pred_fallthru
      _
    // Predicated region
    $region74: #{tpu_custom_call.1} parent=1 // pred_check
      _
    $region75: #{tpu_custom_call.1} parent=1 // pred_check_branch
      %142 = sbr.rel (0) target = $region77
    $region76: #{tpu_custom_call.1} parent=1 // pred_region
      %143 = dma.done [#allocation7], 256
    $region77: #{tpu_custom_call.1} parent=1 // pred_fallthru
      _
    // Predicated region
    $region78: #{tpu_custom_call.1} parent=1 // pred_check
      _
    $region79: #{tpu_custom_call.1} parent=1 // pred_check_branch
      %145 = sbr.rel (0) target = $region81
    $region80: #{tpu_custom_call.1} parent=1 // pred_region
      %146 = dma.done [#allocation10], 256
    $region81: #{tpu_custom_call.1} parent=1 // pred_fallthru
      _
    // Predicated region
    $region82: #{tpu_custom_call.1} parent=1 // pred_check
      _
    $region83: #{tpu_custom_call.1} parent=1 // pred_check_branch
      %148 = sbr.rel (0) target = $region85
    $region84: #{tpu_custom_call.1} parent=1 // pred_region
      %149 = dma.done [#allocation10], 256
    $region85: #{tpu_custom_call.1} parent=1 // pred_fallthru
      _
    // Predicated region
    $region86: #{tpu_custom_call.1} parent=1 // pred_check
      _
    $region87: #{tpu_custom_call.1} parent=1 // pred_check_branch
      %151 = sbr.rel (0) target = $region89
    $region88: #{tpu_custom_call.1} parent=1 // pred_region
      %152 = dma.done [#allocation13], 256
    $region89: #{tpu_custom_call.1} parent=1 // pred_fallthru
      _
    // Predicated region
    $region90: #{tpu_custom_call.1} parent=1 // pred_check
      _
    $region91: #{tpu_custom_call.1} parent=1 // pred_check_branch
      %154 = sbr.rel (0) target = $region93
    $region92: #{tpu_custom_call.1} parent=1 // pred_region
      %155 = dma.done [#allocation13], 256
    $region93: #{tpu_custom_call.1} parent=1 // pred_fallthru
      _
    // Predicated region
    $region94: #{tpu_custom_call.1} parent=1 // pred_check
      _
    $region95: #{tpu_custom_call.1} parent=1 // pred_check_branch
      %157 = sbr.rel (0) target = $region97
    $region96: #{tpu_custom_call.1} parent=1 // pred_region
      %158 = dma.done [#allocation16], 16
    $region97: #{tpu_custom_call.1} parent=1 // pred_fallthru
      _
    // Predicated region
    $region98: #{tpu_custom_call.1} parent=1 // pred_check
      _
    $region99: #{tpu_custom_call.1} parent=1 // pred_check_branch
      %160 = sbr.rel (0) target = $region101
    $region100: #{tpu_custom_call.1} parent=1 // pred_region
      %161 = dma.done [#allocation16], 16
    $region101: #{tpu_custom_call.1} parent=1 // pred_fallthru
      _
    // Predicated region
    $region102: #{tpu_custom_call.1} parent=1 // pred_check
      _
    $region103: #{tpu_custom_call.1} parent=1 // pred_check_branch
      %163 = sbr.rel (0) target = $region105
    $region104: #{tpu_custom_call.1} parent=1 // pred_region
      %164 = dma.done [#allocation19], 256
    $region105: #{tpu_custom_call.1} parent=1 // pred_fallthru
      _
    %v166 = vld [vmem:[#allocation6] sm:$0xff]
    %v167 = vld [vmem:[#allocation6 + $0x8] sm:$0xff]
    %v168 = vld [vmem:[%s14] sm:$0x1]
    %v169 = vld [vmem:[%s15] sm:$0x1]
    %vm170 = vcmask 261120
    %v171 = vsel %vm170, %v166, 0.0
    %172 = vadd.xlane.f32.xlu0 %v171
    %v173 = vpop.xlane.xlu0 %172
    %v174 = vsel %vm170, %v167, 0.0
    %175 = vadd.xlane.f32.xlu0 %v174
    %v176 = vpop.xlane.xlu0 %175
    %v177 = vrcp.pop 32.0
    %v178 = vmul.f32 %v173, %v177
    %v179 = vmul.f32 %v176, %v177
    %v180 = vsub.f32 %v166, %v178
    %v181 = vsub.f32 %v167, %v179
    %v182 = vmul.f32 %v180, %v180
    %v183 = vmul.f32 %v181, %v181
    %v184 = vsel %vm170, %v182, 0.0
    %185 = vadd.xlane.f32.xlu0 %v184
    %v186 = vpop.xlane.xlu0 %185
    %v187 = vsel %vm170, %v183, 0.0
    %188 = vadd.xlane.f32.xlu0 %v187
    %v189 = vpop.xlane.xlu0 %188
    %v190 = vmul.f32 %v186, %v177
    %v191 = vmul.f32 %v189, %v177
    %v192 = vadd.f32 %v190, 1e-05
    %v193 = vadd.f32 %v191, 1e-05
    %v194 = vrsqrt.pop %v192
    %v195 = vrsqrt.pop %v193
    %v196 = vmul.f32 %v180, %v194
    %v197 = vmul.f32 %v181, %v195
    %v199 = vlaneseq
    %v200 = vshrl.u32 %v199, 7
    %v201 = vsub.s32 0, %v200
    %v202 = vrot.slane %v168, %v201
    %v204 = vmul.f32 %v196, %v202
    %v205 = vmul.f32 %v197, %v202
    %v207 = vlaneseq
    %v208 = vshrl.u32 %v207, 7
    %v209 = vsub.s32 0, %v208
    %v210 = vrot.slane %v169, %v209
    %v212 = vadd.f32 %v204, %v210
    %v213 = vadd.f32 %v205, %v210
    %v214 = vpack.c.bf16 %v213, %v212
    %v215 = vld [vmem:[#allocation11] sm:$0xf]
    %v216 = vld [vmem:[#allocation11 + $0x4] sm:$0xf]
    %v217 = vld [vmem:[#allocation11 + $0x8] sm:$0xf]
    %v218 = vld [vmem:[#allocation11 + $0xc] sm:$0xf]
    %v219 = vld [vmem:[%s5] sm:$0x1]
    %v221 = vlaneseq
    %v222 = vshrl.u32 %v221, 7
    %v223 = vsub.s32 0, %v222
    %v224 = vrot.slane %v219, %v223
    %v230 = vunpack.c.l.b16 %v215
    %v231 = vunpack.c.l.b16 %v216
    %v232 = vunpack.c.l.b16 %v217
    %v233 = vunpack.c.l.b16 %v218
    %v234 = vpack.c.b16 %v231, %v230
    %v235 = vpack.c.b16 %v233, %v232
    %v239 = vsel %vm170, %v214, 0
    %241 = vmatprep.subr.bf16.mxu0 0
    %242 = vmatpush1.bf16.msra.mxu0 %v234
    %243 = vmatprep.subr.bf16.mxu0 0
    %244 = vmatpush1.bf16.msra.mxu0 %v235
    %245 = vmatprep.subr.bf16.mxu0 0
    %246 = vmatpush1.bf16.msra.mxu0 0
    %247 = vmatprep.subr.bf16.mxu0 0
    %248 = vmatpush1.bf16.msra.mxu0 0
    %249 = vmatprep.subr.bf16.mxu0 0
    %250 = vmatpush1.bf16.msra.mxu0 0
    %251 = vmatprep.subr.bf16.mxu0 0
    %252 = vmatpush1.bf16.msra.mxu0 0
    %253 = vmatprep.subr.bf16.mxu0 0
    %254 = vmatpush1.bf16.msra.mxu0 0
    %255 = vmatprep.subr.bf16.mxu0 0
    %256 = vmatpush1.bf16.msra.mxu0 0
    %257 = vmatprep.subr.bf16.mxu0 0
    %258 = vmatpush1.bf16.msra.mxu0 0
    %259 = vmatprep.subr.bf16.mxu0 0
    %260 = vmatpush1.bf16.msra.mxu0 0
    %261 = vmatprep.subr.bf16.mxu0 0
    %262 = vmatpush1.bf16.msra.mxu0 0
    %263 = vmatprep.subr.bf16.mxu0 0
    %264 = vmatpush1.bf16.msra.mxu0 0
    %265 = vmatprep.subr.bf16.mxu0 0
    %266 = vmatpush1.bf16.msra.mxu0 0
    %267 = vmatprep.subr.bf16.mxu0 0
    %268 = vmatpush1.bf16.msra.mxu0 0
    %269 = vmatprep.subr.bf16.mxu0 0
    %270 = vmatpush1.bf16.msra.mxu0 0
    %271 = vmatprep.subr.bf16.mxu0 0
    %272 = vmatpush1.bf16.msra.mxu0 0
    %273 = vmatprep.mubr.bf16.mxu0 0
    %274 = vmatmul.mubr.bf16.gmra.mrb[0].mxu0 %v239
    %v275 = vpop.f32.mrb[0].mxu0
    %v276 = vadd.f32 %v224, %v275
    %v277 = vpop.f32.mrb[0].mxu0
    %v278 = vpop.f32.mrb[0].mxu0
    %v279 = vadd.f32 %v224, %v278
    %v280 = vpop.f32.mrb[0].mxu0
    %281 = vdwg.mxu0
    %v282 = vmul.f32 %v276, 0.125
    %v283 = vmul.f32 %v279, 0.125
    %v284 = vld [vmem:[#allocation12] sm:$0xf]
    %v285 = vld [vmem:[#allocation12 + $0x4] sm:$0xf]
    %v286 = vld [vmem:[#allocation12 + $0x8] sm:$0xf]
    %v287 = vld [vmem:[#allocation12 + $0xc] sm:$0xf]
    %v288 = vld [vmem:[%s6] sm:$0x1]
    %v290 = vlaneseq
    %v291 = vshrl.u32 %v290, 7
    %v292 = vsub.s32 0, %v291
    %v293 = vrot.slane %v288, %v292
    %v299 = vunpack.c.l.b16 %v284
    %v300 = vunpack.c.l.b16 %v285
    %v301 = vunpack.c.l.b16 %v286
    %v302 = vunpack.c.l.b16 %v287
    %v303 = vpack.c.b16 %v300, %v299
    %v304 = vpack.c.b16 %v302, %v301
    %307 = vmatprep.subr.bf16.mxu0 0
    %308 = vmatpush1.bf16.msra.mxu0 %v303
    %309 = vmatprep.subr.bf16.mxu0 0
    %310 = vmatpush1.bf16.msra.mxu0 %v304
    %311 = vmatprep.subr.bf16.mxu0 0
    %312 = vmatpush1.bf16.msra.mxu0 0
    %313 = vmatprep.subr.bf16.mxu0 0
    %314 = vmatpush1.bf16.msra.mxu0 0
    %315 = vmatprep.subr.bf16.mxu0 0
    %316 = vmatpush1.bf16.msra.mxu0 0
    %317 = vmatprep.subr.bf16.mxu0 0
    %318 = vmatpush1.bf16.msra.mxu0 0
    %319 = vmatprep.subr.bf16.mxu0 0
    %320 = vmatpush1.bf16.msra.mxu0 0
    %321 = vmatprep.subr.bf16.mxu0 0
    %322 = vmatpush1.bf16.msra.mxu0 0
    %323 = vmatprep.subr.bf16.mxu0 0
    %324 = vmatpush1.bf16.msra.mxu0 0
    %325 = vmatprep.subr.bf16.mxu0 0
    %326 = vmatpush1.bf16.msra.mxu0 0
    %327 = vmatprep.subr.bf16.mxu0 0
    %328 = vmatpush1.bf16.msra.mxu0 0
    %329 = vmatprep.subr.bf16.mxu0 0
    %330 = vmatpush1.bf16.msra.mxu0 0
    %331 = vmatprep.subr.bf16.mxu0 0
    %332 = vmatpush1.bf16.msra.mxu0 0
    %333 = vmatprep.subr.bf16.mxu0 0
    %334 = vmatpush1.bf16.msra.mxu0 0
    %335 = vmatprep.subr.bf16.mxu0 0
    %336 = vmatpush1.bf16.msra.mxu0 0
    %337 = vmatprep.subr.bf16.mxu0 0
    %338 = vmatpush1.bf16.msra.mxu0 0
    %339 = vmatprep.mubr.bf16.mxu0 0
    %340 = vmatmul.mubr.bf16.gmra.mrb[0].mxu0 %v239
    %v341 = vpop.f32.mrb[0].mxu0
    %v342 = vadd.f32 %v293, %v341
    %v343 = vpop.f32.mrb[0].mxu0
    %v344 = vpop.f32.mrb[0].mxu0
    %v345 = vadd.f32 %v293, %v344
    %v346 = vpop.f32.mrb[0].mxu0
    %347 = vdwg.mxu0
    %v348 = vld [vmem:[#allocation14] sm:$0xf]
    %v349 = vld [vmem:[#allocation14 + $0x4] sm:$0xf]
    %v350 = vld [vmem:[#allocation14 + $0x8] sm:$0xf]
    %v351 = vld [vmem:[#allocation14 + $0xc] sm:$0xf]
    %v352 = vld [vmem:[#allocation15] sm:$0x1]
    %v354 = vlaneseq
    %v355 = vshrl.u32 %v354, 7
    %v356 = vsub.s32 0, %v355
    %v357 = vrot.slane %v352, %v356
    %v363 = vunpack.c.l.b16 %v348
    %v364 = vunpack.c.l.b16 %v349
    %v365 = vunpack.c.l.b16 %v350
    %v366 = vunpack.c.l.b16 %v351
    %v367 = vpack.c.b16 %v364, %v363
    %v368 = vpack.c.b16 %v366, %v365
    %371 = vmatprep.subr.bf16.mxu0 0
    %372 = vmatpush1.bf16.msra.mxu0 %v367
    %373 = vmatprep.subr.bf16.mxu0 0
    %374 = vmatpush1.bf16.msra.mxu0 %v368
    %375 = vmatprep.subr.bf16.mxu0 0
    %376 = vmatpush1.bf16.msra.mxu0 0
    %377 = vmatprep.subr.bf16.mxu0 0
    %378 = vmatpush1.bf16.msra.mxu0 0
    %379 = vmatprep.subr.bf16.mxu0 0
    %380 = vmatpush1.bf16.msra.mxu0 0
    %381 = vmatprep.subr.bf16.mxu0 0
    %382 = vmatpush1.bf16.msra.mxu0 0
    %383 = vmatprep.subr.bf16.mxu0 0
    %384 = vmatpush1.bf16.msra.mxu0 0
    %385 = vmatprep.subr.bf16.mxu0 0
    %386 = vmatpush1.bf16.msra.mxu0 0
    %387 = vmatprep.subr.bf16.mxu0 0
    %388 = vmatpush1.bf16.msra.mxu0 0
    %389 = vmatprep.subr.bf16.mxu0 0
    %390 = vmatpush1.bf16.msra.mxu0 0
    %391 = vmatprep.subr.bf16.mxu0 0
    %392 = vmatpush1.bf16.msra.mxu0 0
    %393 = vmatprep.subr.bf16.mxu0 0
    %394 = vmatpush1.bf16.msra.mxu0 0
    %395 = vmatprep.subr.bf16.mxu0 0
    %396 = vmatpush1.bf16.msra.mxu0 0
    %397 = vmatprep.subr.bf16.mxu0 0
    %398 = vmatpush1.bf16.msra.mxu0 0
    %399 = vmatprep.subr.bf16.mxu0 0
    %400 = vmatpush1.bf16.msra.mxu0 0
    %401 = vmatprep.subr.bf16.mxu0 0
    %402 = vmatpush1.bf16.msra.mxu0 0
    %403 = vmatprep.mubr.bf16.mxu0 0
    %404 = vmatmul.mubr.bf16.gmra.mrb[0].mxu0 %v239
    %v405 = vpop.f32.mrb[0].mxu0
    %v406 = vadd.f32 %v357, %v405
    %v407 = vpop.f32.mrb[0].mxu0
    %v408 = vpop.f32.mrb[0].mxu0
    %v409 = vadd.f32 %v357, %v408
    %v410 = vpop.f32.mrb[0].mxu0
    %411 = vdwg.mxu0
    %v412 = vpack.c.bf16 %v283, %v282
    %vm413 = vcmask 64512
    %414 = vst.msk [vmem:[#allocation2] sm:$0xff] %vm413, %v412
    %v415 = vpack.c.bf16 %v345, %v342
    %416 = vst.msk [vmem:[#allocation3] sm:$0xff] %vm413, %v415
    %v417 = vpack.c.bf16 %v409, %v406
    %418 = vst.msk [vmem:[#allocation4] sm:$0xff] %vm413, %v417
    %420 = vrot.lane.b32.xlu0 %v412, 120
    %v421 = vpop.permute.xlu0 %420
    %s423 = scalar_lea.vmem [#allocation2], 8
    %424 = vst.msk [vmem:[%s423] sm:$0xff] %vm413, %v421
    %426 = vrot.lane.b32.xlu0 %v415, 120
    %v427 = vpop.permute.xlu0 %426
    %s429 = scalar_lea.vmem [#allocation3], 8
    %430 = vst.msk [vmem:[%s429] sm:$0xff] %vm413, %v427
    %432 = vrot.lane.b32.xlu0 %v417, 120
    %v433 = vpop.permute.xlu0 %432
    %s435 = scalar_lea.vmem [#allocation4], 8
    %436 = vst.msk [vmem:[%s435] sm:$0xff] %vm413, %v433
    %437 = vrot.lane.b32.xlu0 %v412, 112
    %v438 = vpop.permute.xlu0 %437
    %s440 = scalar_lea.vmem [#allocation2], 16
    %441 = vst.msk [vmem:[%s440] sm:$0xff] %vm413, %v438
    %442 = vrot.lane.b32.xlu0 %v415, 112
    %v443 = vpop.permute.xlu0 %442
    %s445 = scalar_lea.vmem [#allocation3], 16
    %446 = vst.msk [vmem:[%s445] sm:$0xff] %vm413, %v443
    %447 = vrot.lane.b32.xlu0 %v417, 112
    %v448 = vpop.permute.xlu0 %447
    %s450 = scalar_lea.vmem [#allocation4], 16
    %451 = vst.msk [vmem:[%s450] sm:$0xff] %vm413, %v448
    %452 = vrot.lane.b32.xlu0 %v412, 104
    %v453 = vpop.permute.xlu0 %452
    %s455 = scalar_lea.vmem [#allocation2], 24
    %456 = vst.msk [vmem:[%s455] sm:$0xff] %vm413, %v453
    %457 = vrot.lane.b32.xlu0 %v415, 104
    %v458 = vpop.permute.xlu0 %457
    %s460 = scalar_lea.vmem [#allocation3], 24
    %461 = vst.msk [vmem:[%s460] sm:$0xff] %vm413, %v458
    %462 = vrot.lane.b32.xlu0 %v417, 104
    %v463 = vpop.permute.xlu0 %462
    %s465 = scalar_lea.vmem [#allocation4], 24
    %466 = vst.msk [vmem:[%s465] sm:$0xff] %vm413, %v463
    %v467 = vld [vmem:[#allocation2] sm:$0xff]
    %v468 = vld [vmem:[#allocation2 + $0x8] sm:$0xff]
    %v469 = vld [vmem:[#allocation2 + $0x10] sm:$0xff]
    %v470 = vld [vmem:[#allocation2 + $0x18] sm:$0xff]
    %v471 = vld [vmem:[#allocation3] sm:$0xff]
    %v472 = vld [vmem:[#allocation3 + $0x8] sm:$0xff]
    %v473 = vld [vmem:[#allocation3 + $0x10] sm:$0xff]
    %v474 = vld [vmem:[#allocation3 + $0x18] sm:$0xff]
    %v475 = vld [vmem:[#allocation9] sm:$0xff]
    %v476 = vld [vmem:[#allocation9 + $0x8] sm:$0xff]
    %v478 = vsel %vm413, %v467, 0
    %v481 = vsel %vm413, %v471, 0
    %483 = vmatprep.subr.bf16.mxu0 0
    %484 = vmatpush1.bf16.xpose.msra.mxu0 %v481
    %485 = vmatprep.subr.bf16.mxu0 0
    %486 = vmatpush1.bf16.xpose.msra.mxu0 0
    %487 = vmatprep.subr.bf16.mxu0 0
    %488 = vmatpush1.bf16.xpose.msra.mxu0 0
    %489 = vmatprep.subr.bf16.mxu0 0
    %490 = vmatpush1.bf16.xpose.msra.mxu0 0
    %491 = vmatprep.subr.bf16.mxu0 0
    %492 = vmatpush1.bf16.xpose.msra.mxu0 0
    %493 = vmatprep.subr.bf16.mxu0 0
    %494 = vmatpush1.bf16.xpose.msra.mxu0 0
    %495 = vmatprep.subr.bf16.mxu0 0
    %496 = vmatpush1.bf16.xpose.msra.mxu0 0
    %497 = vmatprep.subr.bf16.mxu0 0
    %498 = vmatpush1.bf16.xpose.msra.mxu0 0
    %499 = vmatprep.subr.bf16.mxu0 0
    %500 = vmatpush1.bf16.xpose.msra.mxu0 0
    %501 = vmatprep.subr.bf16.mxu0 0
    %502 = vmatpush1.bf16.xpose.msra.mxu0 0
    %503 = vmatprep.subr.bf16.mxu0 0
    %504 = vmatpush1.bf16.xpose.msra.mxu0 0
    %505 = vmatprep.subr.bf16.mxu0 0
    %506 = vmatpush1.bf16.xpose.msra.mxu0 0
    %507 = vmatprep.subr.bf16.mxu0 0
    %508 = vmatpush1.bf16.xpose.msra.mxu0 0
    %509 = vmatprep.subr.bf16.mxu0 0
    %510 = vmatpush1.bf16.xpose.msra.mxu0 0
    %511 = vmatprep.subr.bf16.mxu0 0
    %512 = vmatpush1.bf16.xpose.msra.mxu0 0
    %513 = vmatprep.subr.bf16.mxu0 0
    %514 = vmatpush1.bf16.xpose.msra.mxu0 0
    %515 = vmatprep.mubr.bf16.mxu0 0
    %516 = vmatmul.mubr.bf16.gmra.mrb[0].mxu0 %v478
    %v517 = vpop.f32.mrb[0].mxu0
    %v518 = vadd.f32 %v475, %v517
    %v519 = vpop.f32.mrb[0].mxu0
    %v520 = vpop.f32.mrb[0].mxu0
    %v521 = vadd.f32 %v476, %v520
    %v522 = vpop.f32.mrb[0].mxu0
    %523 = vdwg.mxu0
    %v525 = vsel %vm413, %v468, 0
    %v528 = vsel %vm413, %v472, 0
    %530 = vmatprep.subr.bf16.mxu0 0
    %531 = vmatpush1.bf16.xpose.msra.mxu0 %v528
    %532 = vmatprep.subr.bf16.mxu0 0
    %533 = vmatpush1.bf16.xpose.msra.mxu0 0
    %534 = vmatprep.subr.bf16.mxu0 0
    %535 = vmatpush1.bf16.xpose.msra.mxu0 0
    %536 = vmatprep.subr.bf16.mxu0 0
    %537 = vmatpush1.bf16.xpose.msra.mxu0 0
    %538 = vmatprep.subr.bf16.mxu0 0
    %539 = vmatpush1.bf16.xpose.msra.mxu0 0
    %540 = vmatprep.subr.bf16.mxu0 0
    %541 = vmatpush1.bf16.xpose.msra.mxu0 0
    %542 = vmatprep.subr.bf16.mxu0 0
    %543 = vmatpush1.bf16.xpose.msra.mxu0 0
    %544 = vmatprep.subr.bf16.mxu0 0
    %545 = vmatpush1.bf16.xpose.msra.mxu0 0
    %546 = vmatprep.subr.bf16.mxu0 0
    %547 = vmatpush1.bf16.xpose.msra.mxu0 0
    %548 = vmatprep.subr.bf16.mxu0 0
    %549 = vmatpush1.bf16.xpose.msra.mxu0 0
    %550 = vmatprep.subr.bf16.mxu0 0
    %551 = vmatpush1.bf16.xpose.msra.mxu0 0
    %552 = vmatprep.subr.bf16.mxu0 0
    %553 = vmatpush1.bf16.xpose.msra.mxu0 0
    %554 = vmatprep.subr.bf16.mxu0 0
    %555 = vmatpush1.bf16.xpose.msra.mxu0 0
    %556 = vmatprep.subr.bf16.mxu0 0
    %557 = vmatpush1.bf16.xpose.msra.mxu0 0
    %558 = vmatprep.subr.bf16.mxu0 0
    %559 = vmatpush1.bf16.xpose.msra.mxu0 0
    %560 = vmatprep.subr.bf16.mxu0 0
    %561 = vmatpush1.bf16.xpose.msra.mxu0 0
    %562 = vmatprep.mubr.bf16.mxu0 0
    %563 = vmatmul.mubr.bf16.gmra.mrb[0].mxu0 %v525
    %v564 = vpop.f32.mrb[0].mxu0
    %v565 = vadd.f32 %v475, %v564
    %v566 = vpop.f32.mrb[0].mxu0
    %v567 = vpop.f32.mrb[0].mxu0
    %v568 = vadd.f32 %v476, %v567
    %v569 = vpop.f32.mrb[0].mxu0
    %570 = vdwg.mxu0
    %v572 = vsel %vm413, %v469, 0
    %v575 = vsel %vm413, %v473, 0
    %577 = vmatprep.subr.bf16.mxu0 0
    %578 = vmatpush1.bf16.xpose.msra.mxu0 %v575
    %579 = vmatprep.subr.bf16.mxu0 0
    %580 = vmatpush1.bf16.xpose.msra.mxu0 0
    %581 = vmatprep.subr.bf16.mxu0 0
    %582 = vmatpush1.bf16.xpose.msra.mxu0 0
    %583 = vmatprep.subr.bf16.mxu0 0
    %584 = vmatpush1.bf16.xpose.msra.mxu0 0
    %585 = vmatprep.subr.bf16.mxu0 0
    %586 = vmatpush1.bf16.xpose.msra.mxu0 0
    %587 = vmatprep.subr.bf16.mxu0 0
    %588 = vmatpush1.bf16.xpose.msra.mxu0 0
    %589 = vmatprep.subr.bf16.mxu0 0
    %590 = vmatpush1.bf16.xpose.msra.mxu0 0
    %591 = vmatprep.subr.bf16.mxu0 0
    %592 = vmatpush1.bf16.xpose.msra.mxu0 0
    %593 = vmatprep.subr.bf16.mxu0 0
    %594 = vmatpush1.bf16.xpose.msra.mxu0 0
    %595 = vmatprep.subr.bf16.mxu0 0
    %596 = vmatpush1.bf16.xpose.msra.mxu0 0
    %597 = vmatprep.subr.bf16.mxu0 0
    %598 = vmatpush1.bf16.xpose.msra.mxu0 0
    %599 = vmatprep.subr.bf16.mxu0 0
    %600 = vmatpush1.bf16.xpose.msra.mxu0 0
    %601 = vmatprep.subr.bf16.mxu0 0
    %602 = vmatpush1.bf16.xpose.msra.mxu0 0
    %603 = vmatprep.subr.bf16.mxu0 0
    %604 = vmatpush1.bf16.xpose.msra.mxu0 0
    %605 = vmatprep.subr.bf16.mxu0 0
    %606 = vmatpush1.bf16.xpose.msra.mxu0 0
    %607 = vmatprep.subr.bf16.mxu0 0
    %608 = vmatpush1.bf16.xpose.msra.mxu0 0
    %609 = vmatprep.mubr.bf16.mxu0 0
    %610 = vmatmul.mubr.bf16.gmra.mrb[0].mxu0 %v572
    %v611 = vpop.f32.mrb[0].mxu0
    %v612 = vadd.f32 %v475, %v611
    %v613 = vpop.f32.mrb[0].mxu0
    %v614 = vpop.f32.mrb[0].mxu0
    %v615 = vadd.f32 %v476, %v614
    %v616 = vpop.f32.mrb[0].mxu0
    %617 = vdwg.mxu0
    %v619 = vsel %vm413, %v470, 0
    %v622 = vsel %vm413, %v474, 0
    %624 = vmatprep.subr.bf16.mxu0 0
    %625 = vmatpush1.bf16.xpose.msra.mxu0 %v622
    %626 = vmatprep.subr.bf16.mxu0 0
    %627 = vmatpush1.bf16.xpose.msra.mxu0 0
    %628 = vmatprep.subr.bf16.mxu0 0
    %629 = vmatpush1.bf16.xpose.msra.mxu0 0
    %630 = vmatprep.subr.bf16.mxu0 0
    %631 = vmatpush1.bf16.xpose.msra.mxu0 0
    %632 = vmatprep.subr.bf16.mxu0 0
    %633 = vmatpush1.bf16.xpose.msra.mxu0 0
    %634 = vmatprep.subr.bf16.mxu0 0
    %635 = vmatpush1.bf16.xpose.msra.mxu0 0
    %636 = vmatprep.subr.bf16.mxu0 0
    %637 = vmatpush1.bf16.xpose.msra.mxu0 0
    %638 = vmatprep.subr.bf16.mxu0 0
    %639 = vmatpush1.bf16.xpose.msra.mxu0 0
    %640 = vmatprep.subr.bf16.mxu0 0
    %641 = vmatpush1.bf16.xpose.msra.mxu0 0
    %642 = vmatprep.subr.bf16.mxu0 0
    %643 = vmatpush1.bf16.xpose.msra.mxu0 0
    %644 = vmatprep.subr.bf16.mxu0 0
    %645 = vmatpush1.bf16.xpose.msra.mxu0 0
    %646 = vmatprep.subr.bf16.mxu0 0
    %647 = vmatpush1.bf16.xpose.msra.mxu0 0
    %648 = vmatprep.subr.bf16.mxu0 0
    %649 = vmatpush1.bf16.xpose.msra.mxu0 0
    %650 = vmatprep.subr.bf16.mxu0 0
    %651 = vmatpush1.bf16.xpose.msra.mxu0 0
    %652 = vmatprep.subr.bf16.mxu0 0
    %653 = vmatpush1.bf16.xpose.msra.mxu0 0
    %654 = vmatprep.subr.bf16.mxu0 0
    %655 = vmatpush1.bf16.xpose.msra.mxu0 0
    %656 = vmatprep.mubr.bf16.mxu0 0
    %657 = vmatmul.mubr.bf16.gmra.mrb[0].mxu0 %v619
    %v658 = vpop.f32.mrb[0].mxu0
    %v659 = vadd.f32 %v475, %v658
    %v660 = vpop.f32.mrb[0].mxu0
    %v661 = vpop.f32.mrb[0].mxu0
    %v662 = vadd.f32 %v476, %v661
    %v663 = vpop.f32.mrb[0].mxu0
    %664 = vdwg.mxu0
    %vm665 = vcmask 130048
    %v666 = vsel %vm665, %v518, -inf
    %667 = vmax.xlane.f32.xlu0 %v666
    %v668 = vpop.xlane.xlu0 %667
    %v669 = vsel %vm665, %v521, -inf
    %670 = vmax.xlane.f32.xlu0 %v669
    %v671 = vpop.xlane.xlu0 %670
    %v672 = vsel %vm665, %v565, -inf
    %673 = vmax.xlane.f32.xlu0 %v672
    %v674 = vpop.xlane.xlu0 %673
    %v675 = vsel %vm665, %v568, -inf
    %676 = vmax.xlane.f32.xlu0 %v675
    %v677 = vpop.xlane.xlu0 %676
    %v678 = vsel %vm665, %v612, -inf
    %679 = vmax.xlane.f32.xlu0 %v678
    %v680 = vpop.xlane.xlu0 %679
    %v681 = vsel %vm665, %v615, -inf
    %682 = vmax.xlane.f32.xlu0 %v681
    %v683 = vpop.xlane.xlu0 %682
    %v684 = vsel %vm665, %v659, -inf
    %685 = vmax.xlane.f32.xlu0 %v684
    %v686 = vpop.xlane.xlu0 %685
    %v687 = vsel %vm665, %v662, -inf
    %688 = vmax.xlane.f32.xlu0 %v687
    %v689 = vpop.xlane.xlu0 %688
    %v690 = vsub.f32 %v518, %v668
    %v691 = vsub.f32 %v521, %v671
    %v692 = vsub.f32 %v565, %v674
    %v693 = vsub.f32 %v568, %v677
    %v694 = vsub.f32 %v612, %v680
    %v695 = vsub.f32 %v615, %v683
    %v696 = vsub.f32 %v659, %v686
    %v697 = vsub.f32 %v662, %v689
    %v698 = vmul.f32 %v690, 1.442695
    %v699 = vpow.pop %v698
    %v700 = vmul.f32 %v691, 1.442695
    %v701 = vpow.pop %v700
    %v702 = vmul.f32 %v692, 1.442695
    %v703 = vpow.pop %v702
    %v704 = vmul.f32 %v693, 1.442695
    %v705 = vpow.pop %v704
    %v706 = vmul.f32 %v694, 1.442695
    %v707 = vpow.pop %v706
    %v708 = vmul.f32 %v695, 1.442695
    %v709 = vpow.pop %v708
    %v710 = vmul.f32 %v696, 1.442695
    %v711 = vpow.pop %v710
    %v712 = vmul.f32 %v697, 1.442695
    %v713 = vpow.pop %v712
    %v714 = vsel %vm665, %v699, 0.0
    %715 = vadd.xlane.f32.xlu0 %v714
    %v716 = vpop.xlane.xlu0 %715
    %v717 = vsel %vm665, %v701, 0.0
    %718 = vadd.xlane.f32.xlu0 %v717
    %v719 = vpop.xlane.xlu0 %718
    %v720 = vsel %vm665, %v703, 0.0
    %721 = vadd.xlane.f32.xlu0 %v720
    %v722 = vpop.xlane.xlu0 %721
    %v723 = vsel %vm665, %v705, 0.0
    %724 = vadd.xlane.f32.xlu0 %v723
    %v725 = vpop.xlane.xlu0 %724
    %v726 = vsel %vm665, %v707, 0.0
    %727 = vadd.xlane.f32.xlu0 %v726
    %v728 = vpop.xlane.xlu0 %727
    %v729 = vsel %vm665, %v709, 0.0
    %730 = vadd.xlane.f32.xlu0 %v729
    %v731 = vpop.xlane.xlu0 %730
    %v732 = vsel %vm665, %v711, 0.0
    %733 = vadd.xlane.f32.xlu0 %v732
    %v734 = vpop.xlane.xlu0 %733
    %v735 = vsel %vm665, %v713, 0.0
    %736 = vadd.xlane.f32.xlu0 %v735
    %v737 = vpop.xlane.xlu0 %736
    %v738 = vrcp.pop %v716
    %v739 = vrcp.pop %v719
    %v740 = vrcp.pop %v722
    %v741 = vrcp.pop %v725
    %v742 = vrcp.pop %v728
    %v743 = vrcp.pop %v731
    %v744 = vrcp.pop %v734
    %v745 = vrcp.pop %v737
    %v746 = vmul.f32 %v699, %v738
    %v747 = vmul.f32 %v701, %v739
    %v748 = vmul.f32 %v703, %v740
    %v749 = vmul.f32 %v705, %v741
    %v750 = vmul.f32 %v707, %v742
    %v751 = vmul.f32 %v709, %v743
    %v752 = vmul.f32 %v711, %v744
    %v753 = vmul.f32 %v713, %v745
    %v754 = vpack.c.bf16 %v747, %v746
    %v755 = vpack.c.bf16 %v749, %v748
    %v756 = vpack.c.bf16 %v751, %v750
    %v757 = vpack.c.bf16 %v753, %v752
    %v758 = vld [vmem:[#allocation4] sm:$0xff]
    %v759 = vld [vmem:[#allocation4 + $0x8] sm:$0xff]
    %v760 = vld [vmem:[#allocation4 + $0x10] sm:$0xff]
    %v761 = vld [vmem:[#allocation4 + $0x18] sm:$0xff]
    %v763 = vsel %vm665, %v754, 0
    %765 = vmatprep.subr.bf16.mxu0 0
    %766 = vmatpush1.bf16.msra.mxu0 %v758
    %767 = vmatprep.subr.bf16.mxu0 0
    %768 = vmatpush1.bf16.msra.mxu0 0
    %769 = vmatprep.subr.bf16.mxu0 0
    %770 = vmatpush1.bf16.msra.mxu0 0
    %771 = vmatprep.subr.bf16.mxu0 0
    %772 = vmatpush1.bf16.msra.mxu0 0
    %773 = vmatprep.subr.bf16.mxu0 0
    %774 = vmatpush1.bf16.msra.mxu0 0
    %775 = vmatprep.subr.bf16.mxu0 0
    %776 = vmatpush1.bf16.msra.mxu0 0
    %777 = vmatprep.subr.bf16.mxu0 0
    %778 = vmatpush1.bf16.msra.mxu0 0
    %779 = vmatprep.subr.bf16.mxu0 0
    %780 = vmatpush1.bf16.msra.mxu0 0
    %781 = vmatprep.subr.bf16.mxu0 0
    %782 = vmatpush1.bf16.msra.mxu0 0
    %783 = vmatprep.subr.bf16.mxu0 0
    %784 = vmatpush1.bf16.msra.mxu0 0
    %785 = vmatprep.subr.bf16.mxu0 0
    %786 = vmatpush1.bf16.msra.mxu0 0
    %787 = vmatprep.subr.bf16.mxu0 0
    %788 = vmatpush1.bf16.msra.mxu0 0
    %789 = vmatprep.subr.bf16.mxu0 0
    %790 = vmatpush1.bf16.msra.mxu0 0
    %791 = vmatprep.subr.bf16.mxu0 0
    %792 = vmatpush1.bf16.msra.mxu0 0
    %793 = vmatprep.subr.bf16.mxu0 0
    %794 = vmatpush1.bf16.msra.mxu0 0
    %795 = vmatprep.subr.bf16.mxu0 0
    %796 = vmatpush1.bf16.msra.mxu0 0
    %797 = vmatprep.mubr.bf16.mxu0 0
    %798 = vmatmul.mubr.bf16.gmra.mrb[0].mxu0 %v763
    %v799 = vpop.f32.mrb[0].mxu0
    %v800 = vadd.f32 0.0, %v799
    %v801 = vpop.f32.mrb[0].mxu0
    %v802 = vpop.f32.mrb[0].mxu0
    %v803 = vadd.f32 0.0, %v802
    %v804 = vpop.f32.mrb[0].mxu0
    %805 = vdwg.mxu0
    %v807 = vsel %vm665, %v755, 0
    %809 = vmatprep.subr.bf16.mxu0 0
    %810 = vmatpush1.bf16.msra.mxu0 %v759
    %811 = vmatprep.subr.bf16.mxu0 0
    %812 = vmatpush1.bf16.msra.mxu0 0
    %813 = vmatprep.subr.bf16.mxu0 0
    %814 = vmatpush1.bf16.msra.mxu0 0
    %815 = vmatprep.subr.bf16.mxu0 0
    %816 = vmatpush1.bf16.msra.mxu0 0
    %817 = vmatprep.subr.bf16.mxu0 0
    %818 = vmatpush1.bf16.msra.mxu0 0
    %819 = vmatprep.subr.bf16.mxu0 0
    %820 = vmatpush1.bf16.msra.mxu0 0
    %821 = vmatprep.subr.bf16.mxu0 0
    %822 = vmatpush1.bf16.msra.mxu0 0
    %823 = vmatprep.subr.bf16.mxu0 0
    %824 = vmatpush1.bf16.msra.mxu0 0
    %825 = vmatprep.subr.bf16.mxu0 0
    %826 = vmatpush1.bf16.msra.mxu0 0
    %827 = vmatprep.subr.bf16.mxu0 0
    %828 = vmatpush1.bf16.msra.mxu0 0
    %829 = vmatprep.subr.bf16.mxu0 0
    %830 = vmatpush1.bf16.msra.mxu0 0
    %831 = vmatprep.subr.bf16.mxu0 0
    %832 = vmatpush1.bf16.msra.mxu0 0
    %833 = vmatprep.subr.bf16.mxu0 0
    %834 = vmatpush1.bf16.msra.mxu0 0
    %835 = vmatprep.subr.bf16.mxu0 0
    %836 = vmatpush1.bf16.msra.mxu0 0
    %837 = vmatprep.subr.bf16.mxu0 0
    %838 = vmatpush1.bf16.msra.mxu0 0
    %839 = vmatprep.subr.bf16.mxu0 0
    %840 = vmatpush1.bf16.msra.mxu0 0
    %841 = vmatprep.mubr.bf16.mxu0 0
    %842 = vmatmul.mubr.bf16.gmra.mrb[0].mxu0 %v807
    %v843 = vpop.f32.mrb[0].mxu0
    %v844 = vadd.f32 0.0, %v843
    %v845 = vpop.f32.mrb[0].mxu0
    %v846 = vpop.f32.mrb[0].mxu0
    %v847 = vadd.f32 0.0, %v846
    %v848 = vpop.f32.mrb[0].mxu0
    %849 = vdwg.mxu0
    %v851 = vsel %vm665, %v756, 0
    %853 = vmatprep.subr.bf16.mxu0 0
    %854 = vmatpush1.bf16.msra.mxu0 %v760
    %855 = vmatprep.subr.bf16.mxu0 0
    %856 = vmatpush1.bf16.msra.mxu0 0
    %857 = vmatprep.subr.bf16.mxu0 0
    %858 = vmatpush1.bf16.msra.mxu0 0
    %859 = vmatprep.subr.bf16.mxu0 0
    %860 = vmatpush1.bf16.msra.mxu0 0
    %861 = vmatprep.subr.bf16.mxu0 0
    %862 = vmatpush1.bf16.msra.mxu0 0
    %863 = vmatprep.subr.bf16.mxu0 0
    %864 = vmatpush1.bf16.msra.mxu0 0
    %865 = vmatprep.subr.bf16.mxu0 0
    %866 = vmatpush1.bf16.msra.mxu0 0
    %867 = vmatprep.subr.bf16.mxu0 0
    %868 = vmatpush1.bf16.msra.mxu0 0
    %869 = vmatprep.subr.bf16.mxu0 0
    %870 = vmatpush1.bf16.msra.mxu0 0
    %871 = vmatprep.subr.bf16.mxu0 0
    %872 = vmatpush1.bf16.msra.mxu0 0
    %873 = vmatprep.subr.bf16.mxu0 0
    %874 = vmatpush1.bf16.msra.mxu0 0
    %875 = vmatprep.subr.bf16.mxu0 0
    %876 = vmatpush1.bf16.msra.mxu0 0
    %877 = vmatprep.subr.bf16.mxu0 0
    %878 = vmatpush1.bf16.msra.mxu0 0
    %879 = vmatprep.subr.bf16.mxu0 0
    %880 = vmatpush1.bf16.msra.mxu0 0
    %881 = vmatprep.subr.bf16.mxu0 0
    %882 = vmatpush1.bf16.msra.mxu0 0
    %883 = vmatprep.subr.bf16.mxu0 0
    %884 = vmatpush1.bf16.msra.mxu0 0
    %885 = vmatprep.mubr.bf16.mxu0 0
    %886 = vmatmul.mubr.bf16.gmra.mrb[0].mxu0 %v851
    %v887 = vpop.f32.mrb[0].mxu0
    %v888 = vadd.f32 0.0, %v887
    %v889 = vpop.f32.mrb[0].mxu0
    %v890 = vpop.f32.mrb[0].mxu0
    %v891 = vadd.f32 0.0, %v890
    %v892 = vpop.f32.mrb[0].mxu0
    %893 = vdwg.mxu0
    %v895 = vsel %vm665, %v757, 0
    %897 = vmatprep.subr.bf16.mxu0 0
    %898 = vmatpush1.bf16.msra.mxu0 %v761
    %899 = vmatprep.subr.bf16.mxu0 0
    %900 = vmatpush1.bf16.msra.mxu0 0
    %901 = vmatprep.subr.bf16.mxu0 0
    %902 = vmatpush1.bf16.msra.mxu0 0
    %903 = vmatprep.subr.bf16.mxu0 0
    %904 = vmatpush1.bf16.msra.mxu0 0
    %905 = vmatprep.subr.bf16.mxu0 0
    %906 = vmatpush1.bf16.msra.mxu0 0
    %907 = vmatprep.subr.bf16.mxu0 0
    %908 = vmatpush1.bf16.msra.mxu0 0
    %909 = vmatprep.subr.bf16.mxu0 0
    %910 = vmatpush1.bf16.msra.mxu0 0
    %911 = vmatprep.subr.bf16.mxu0 0
    %912 = vmatpush1.bf16.msra.mxu0 0
    %913 = vmatprep.subr.bf16.mxu0 0
    %914 = vmatpush1.bf16.msra.mxu0 0
    %915 = vmatprep.subr.bf16.mxu0 0
    %916 = vmatpush1.bf16.msra.mxu0 0
    %917 = vmatprep.subr.bf16.mxu0 0
    %918 = vmatpush1.bf16.msra.mxu0 0
    %919 = vmatprep.subr.bf16.mxu0 0
    %920 = vmatpush1.bf16.msra.mxu0 0
    %921 = vmatprep.subr.bf16.mxu0 0
    %922 = vmatpush1.bf16.msra.mxu0 0
    %923 = vmatprep.subr.bf16.mxu0 0
    %924 = vmatpush1.bf16.msra.mxu0 0
    %925 = vmatprep.subr.bf16.mxu0 0
    %926 = vmatpush1.bf16.msra.mxu0 0
    %927 = vmatprep.subr.bf16.mxu0 0
    %928 = vmatpush1.bf16.msra.mxu0 0
    %929 = vmatprep.mubr.bf16.mxu0 0
    %930 = vmatmul.mubr.bf16.gmra.mrb[0].mxu0 %v895
    %v931 = vpop.f32.mrb[0].mxu0
    %v932 = vadd.f32 0.0, %v931
    %v933 = vpop.f32.mrb[0].mxu0
    %v934 = vpop.f32.mrb[0].mxu0
    %v935 = vadd.f32 0.0, %v934
    %v936 = vpop.f32.mrb[0].mxu0
    %937 = vdwg.mxu0
    %v938 = vpack.c.bf16 %v803, %v800
    %939 = vst.msk [vmem:[#allocation5] sm:$0xff] %vm413, %v938
    %v940 = vpack.c.bf16 %v847, %v844
    %942 = vrot.lane.b32.xlu0 %v940, 8
    %v943 = vpop.permute.xlu0 %942
    %vm945 = vcmask 130112
    %946 = vst.msk [vmem:[#allocation5] sm:$0xff] %vm945, %v943
    %v947 = vpack.c.bf16 %v891, %v888
    %949 = vrot.lane.b32.xlu0 %v947, 16
    %v950 = vpop.permute.xlu0 %949
    %vm952 = vcmask 195712
    %953 = vst.msk [vmem:[#allocation5] sm:$0xff] %vm952, %v950
    %v954 = vpack.c.bf16 %v935, %v932
    %956 = vrot.lane.b32.xlu0 %v954, 24
    %v957 = vpop.permute.xlu0 %956
    %vm959 = vcmask 261312
    %960 = vst.msk [vmem:[#allocation5] sm:$0xff] %vm959, %v957
    %v961 = vld [vmem:[#allocation5] sm:$0xff]
    %v962 = vld [vmem:[%s8] sm:$0xf]
    %v963 = vld [vmem:[%s8 + $0x4] sm:$0xf]
    %v964 = vld [vmem:[%s8 + $0x8] sm:$0xf]
    %v965 = vld [vmem:[%s8 + $0xc] sm:$0xf]
    %v966 = vld [vmem:[#allocation17] sm:$0x1]
    %v968 = vlaneseq
    %v969 = vshrl.u32 %v968, 7
    %v970 = vsub.s32 0, %v969
    %v971 = vrot.slane %v966, %v970
    %v977 = vunpack.c.l.b16 %v962
    %v978 = vunpack.c.l.b16 %v963
    %v979 = vunpack.c.l.b16 %v964
    %v980 = vunpack.c.l.b16 %v965
    %v981 = vpack.c.b16 %v978, %v977
    %v982 = vpack.c.b16 %v980, %v979
    %v986 = vsel %vm170, %v961, 0
    %988 = vmatprep.subr.bf16.mxu0 0
    %989 = vmatpush1.bf16.msra.mxu0 %v981
    %990 = vmatprep.subr.bf16.mxu0 0
    %991 = vmatpush1.bf16.msra.mxu0 %v982
    %992 = vmatprep.subr.bf16.mxu0 0
    %993 = vmatpush1.bf16.msra.mxu0 0
    %994 = vmatprep.subr.bf16.mxu0 0
    %995 = vmatpush1.bf16.msra.mxu0 0
    %996 = vmatprep.subr.bf16.mxu0 0
    %997 = vmatpush1.bf16.msra.mxu0 0
    %998 = vmatprep.subr.bf16.mxu0 0
    %999 = vmatpush1.bf16.msra.mxu0 0
    %1000 = vmatprep.subr.bf16.mxu0 0
    %1001 = vmatpush1.bf16.msra.mxu0 0
    %1002 = vmatprep.subr.bf16.mxu0 0
    %1003 = vmatpush1.bf16.msra.mxu0 0
    %1004 = vmatprep.subr.bf16.mxu0 0
    %1005 = vmatpush1.bf16.msra.mxu0 0
    %1006 = vmatprep.subr.bf16.mxu0 0
    %1007 = vmatpush1.bf16.msra.mxu0 0
    %1008 = vmatprep.subr.bf16.mxu0 0
    %1009 = vmatpush1.bf16.msra.mxu0 0
    %1010 = vmatprep.subr.bf16.mxu0 0
    %1011 = vmatpush1.bf16.msra.mxu0 0
    %1012 = vmatprep.subr.bf16.mxu0 0
    %1013 = vmatpush1.bf16.msra.mxu0 0
    %1014 = vmatprep.subr.bf16.mxu0 0
    %1015 = vmatpush1.bf16.msra.mxu0 0
    %1016 = vmatprep.subr.bf16.mxu0 0
    %1017 = vmatpush1.bf16.msra.mxu0 0
    %1018 = vmatprep.subr.bf16.mxu0 0
    %1019 = vmatpush1.bf16.msra.mxu0 0
    %1020 = vmatprep.mubr.bf16.mxu0 0
    %1021 = vmatmul.mubr.bf16.gmra.mrb[0].mxu0 %v986
    %v1022 = vpop.f32.mrb[0].mxu0
    %v1023 = vadd.f32 %v971, %v1022
    %v1024 = vpop.f32.mrb[0].mxu0
    %v1025 = vpop.f32.mrb[0].mxu0
    %v1026 = vadd.f32 %v971, %v1025
    %v1027 = vpop.f32.mrb[0].mxu0
    %1028 = vdwg.mxu0
    %v1029 = vadd.f32 %v166, %v1023
    %v1030 = vadd.f32 %v167, %v1026
    %v1031 = vld [vmem:[%s16] sm:$0x1]
    %v1032 = vld [vmem:[%s17] sm:$0x1]
    %v1033 = vsel %vm170, %v1029, 0.0
    %1034 = vadd.xlane.f32.xlu0 %v1033
    %v1035 = vpop.xlane.xlu0 %1034
    %v1036 = vsel %vm170, %v1030, 0.0
    %1037 = vadd.xlane.f32.xlu0 %v1036
    %v1038 = vpop.xlane.xlu0 %1037
    %v1039 = vmul.f32 %v1035, %v177
    %v1040 = vmul.f32 %v1038, %v177
    %v1041 = vsub.f32 %v1029, %v1039
    %v1042 = vsub.f32 %v1030, %v1040
    %v1043 = vmul.f32 %v1041, %v1041
    %v1044 = vmul.f32 %v1042, %v1042
    %v1045 = vsel %vm170, %v1043, 0.0
    %1046 = vadd.xlane.f32.xlu0 %v1045
    %v1047 = vpop.xlane.xlu0 %1046
    %v1048 = vsel %vm170, %v1044, 0.0
    %1049 = vadd.xlane.f32.xlu0 %v1048
    %v1050 = vpop.xlane.xlu0 %1049
    %v1051 = vmul.f32 %v1047, %v177
    %v1052 = vmul.f32 %v1050, %v177
    %v1053 = vadd.f32 %v1051, 1e-05
    %v1054 = vadd.f32 %v1052, 1e-05
    %v1055 = vrsqrt.pop %v1053
    %v1056 = vrsqrt.pop %v1054
    %v1057 = vmul.f32 %v1041, %v1055
    %v1058 = vmul.f32 %v1042, %v1056
    %v1060 = vlaneseq
    %v1061 = vshrl.u32 %v1060, 7
    %v1062 = vsub.s32 0, %v1061
    %v1063 = vrot.slane %v1031, %v1062
    %v1065 = vmul.f32 %v1057, %v1063
    %v1066 = vmul.f32 %v1058, %v1063
    %v1068 = vlaneseq
    %v1069 = vshrl.u32 %v1068, 7
    %v1070 = vsub.s32 0, %v1069
    %v1071 = vrot.slane %v1032, %v1070
    %v1073 = vadd.f32 %v1065, %v1071
    %v1074 = vadd.f32 %v1066, %v1071
    %v1075 = vpack.c.bf16 %v1074, %v1073
    %v1076 = vld [vmem:[%s10] sm:$0xf]
    %v1077 = vld [vmem:[%s10 + $0x4] sm:$0xf]
    %v1078 = vld [vmem:[%s10 + $0x8] sm:$0xf]
    %v1079 = vld [vmem:[%s10 + $0xc] sm:$0xf]
    %v1080 = vld [vmem:[%s11] sm:$0x1]
    %v1082 = vlaneseq
    %v1083 = vshrl.u32 %v1082, 7
    %v1084 = vsub.s32 0, %v1083
    %v1085 = vrot.slane %v1080, %v1084
    %v1091 = vunpack.c.l.b16 %v1076
    %v1092 = vunpack.c.l.b16 %v1077
    %v1093 = vunpack.c.l.b16 %v1078
    %v1094 = vunpack.c.l.b16 %v1079
    %v1095 = vpack.c.b16 %v1092, %v1091
    %v1096 = vpack.c.b16 %v1094, %v1093
    %v1100 = vsel %vm170, %v1075, 0
    %1102 = vmatprep.subr.bf16.mxu0 0
    %1103 = vmatpush1.bf16.msra.mxu0 %v1095
    %1104 = vmatprep.subr.bf16.mxu0 0
    %1105 = vmatpush1.bf16.msra.mxu0 %v1096
    %1106 = vmatprep.subr.bf16.mxu0 0
    %1107 = vmatpush1.bf16.msra.mxu0 0
    %1108 = vmatprep.subr.bf16.mxu0 0
    %1109 = vmatpush1.bf16.msra.mxu0 0
    %1110 = vmatprep.subr.bf16.mxu0 0
    %1111 = vmatpush1.bf16.msra.mxu0 0
    %1112 = vmatprep.subr.bf16.mxu0 0
    %1113 = vmatpush1.bf16.msra.mxu0 0
    %1114 = vmatprep.subr.bf16.mxu0 0
    %1115 = vmatpush1.bf16.msra.mxu0 0
    %1116 = vmatprep.subr.bf16.mxu0 0
    %1117 = vmatpush1.bf16.msra.mxu0 0
    %1118 = vmatprep.subr.bf16.mxu0 0
    %1119 = vmatpush1.bf16.msra.mxu0 0
    %1120 = vmatprep.subr.bf16.mxu0 0
    %1121 = vmatpush1.bf16.msra.mxu0 0
    %1122 = vmatprep.subr.bf16.mxu0 0
    %1123 = vmatpush1.bf16.msra.mxu0 0
    %1124 = vmatprep.subr.bf16.mxu0 0
    %1125 = vmatpush1.bf16.msra.mxu0 0
    %1126 = vmatprep.subr.bf16.mxu0 0
    %1127 = vmatpush1.bf16.msra.mxu0 0
    %1128 = vmatprep.subr.bf16.mxu0 0
    %1129 = vmatpush1.bf16.msra.mxu0 0
    %1130 = vmatprep.subr.bf16.mxu0 0
    %1131 = vmatpush1.bf16.msra.mxu0 0
    %1132 = vmatprep.subr.bf16.mxu0 0
    %1133 = vmatpush1.bf16.msra.mxu0 0
    %1134 = vmatprep.mubr.bf16.mxu0 0
    %1135 = vmatmul.mubr.bf16.gmra.mrb[0].mxu0 %v1100
    %v1136 = vpop.f32.mrb[0].mxu0
    %v1137 = vadd.f32 %v1085, %v1136
    %v1138 = vpop.f32.mrb[0].mxu0
    %v1139 = vpop.f32.mrb[0].mxu0
    %v1140 = vadd.f32 %v1085, %v1139
    %v1141 = vpop.f32.mrb[0].mxu0
    %1142 = vdwg.mxu0
    %v1143 = vmax.f32 %v1137, 0.0
    %v1144 = vmax.f32 %v1140, 0.0
    %v1145 = vpack.c.bf16 %v1144, %v1143
    %v1146 = vld [vmem:[#allocation18] sm:$0xf]
    %v1147 = vld [vmem:[#allocation18 + $0x4] sm:$0xf]
    %v1148 = vld [vmem:[#allocation18 + $0x8] sm:$0xf]
    %v1149 = vld [vmem:[#allocation18 + $0xc] sm:$0xf]
    %v1150 = vld [vmem:[%s13] sm:$0x1]
    %v1152 = vlaneseq
    %v1153 = vshrl.u32 %v1152, 7
    %v1154 = vsub.s32 0, %v1153
    %v1155 = vrot.slane %v1150, %v1154
    %v1161 = vunpack.c.l.b16 %v1146
    %v1162 = vunpack.c.l.b16 %v1147
    %v1163 = vunpack.c.l.b16 %v1148
    %v1164 = vunpack.c.l.b16 %v1149
    %v1165 = vpack.c.b16 %v1162, %v1161
    %v1166 = vpack.c.b16 %v1164, %v1163
    %v1170 = vsel %vm170, %v1145, 0
    %1172 = vmatprep.subr.bf16.mxu0 0
    %1173 = vmatpush1.bf16.msra.mxu0 %v1165
    %1174 = vmatprep.subr.bf16.mxu0 0
    %1175 = vmatpush1.bf16.msra.mxu0 %v1166
    %1176 = vmatprep.subr.bf16.mxu0 0
    %1177 = vmatpush1.bf16.msra.mxu0 0
    %1178 = vmatprep.subr.bf16.mxu0 0
    %1179 = vmatpush1.bf16.msra.mxu0 0
    %1180 = vmatprep.subr.bf16.mxu0 0
    %1181 = vmatpush1.bf16.msra.mxu0 0
    %1182 = vmatprep.subr.bf16.mxu0 0
    %1183 = vmatpush1.bf16.msra.mxu0 0
    %1184 = vmatprep.subr.bf16.mxu0 0
    %1185 = vmatpush1.bf16.msra.mxu0 0
    %1186 = vmatprep.subr.bf16.mxu0 0
    %1187 = vmatpush1.bf16.msra.mxu0 0
    %1188 = vmatprep.subr.bf16.mxu0 0
    %1189 = vmatpush1.bf16.msra.mxu0 0
    %1190 = vmatprep.subr.bf16.mxu0 0
    %1191 = vmatpush1.bf16.msra.mxu0 0
    %1192 = vmatprep.subr.bf16.mxu0 0
    %1193 = vmatpush1.bf16.msra.mxu0 0
    %1194 = vmatprep.subr.bf16.mxu0 0
    %1195 = vmatpush1.bf16.msra.mxu0 0
    %1196 = vmatprep.subr.bf16.mxu0 0
    %1197 = vmatpush1.bf16.msra.mxu0 0
    %1198 = vmatprep.subr.bf16.mxu0 0
    %1199 = vmatpush1.bf16.msra.mxu0 0
    %1200 = vmatprep.subr.bf16.mxu0 0
    %1201 = vmatpush1.bf16.msra.mxu0 0
    %1202 = vmatprep.subr.bf16.mxu0 0
    %1203 = vmatpush1.bf16.msra.mxu0 0
    %1204 = vmatprep.mubr.bf16.mxu0 0
    %1205 = vmatmul.mubr.bf16.gmra.mrb[0].mxu0 %v1170
    %v1206 = vpop.f32.mrb[0].mxu0
    %v1207 = vadd.f32 %v1155, %v1206
    %v1208 = vpop.f32.mrb[0].mxu0
    %v1209 = vpop.f32.mrb[0].mxu0
    %v1210 = vadd.f32 %v1155, %v1209
    %v1211 = vpop.f32.mrb[0].mxu0
    %1212 = vdwg.mxu0
    %v1213 = vadd.f32 %v1029, %v1207
    %v1214 = vadd.f32 %v1030, %v1210
    %1215 = vst.msk [vmem:[#allocation20] sm:$0xff] %vm170, %v1213
    %1216 = vst.msk [vmem:[#allocation20 + $0x8] sm:$0xff] %vm170, %v1214
    // Predicated region
    $region106: #{tpu_custom_call.1} parent=1 // pred_check
      _
    $region107: #{tpu_custom_call.1} parent=1 // pred_check_branch
      %1218 = sbr.rel (0) target = $region109
    $region108: #{tpu_custom_call.1} parent=1 // pred_region
      %s1220 = ssub.s32 256, 256
      %1221 = vsyncadd [#allocation8], %s1220
      %s1222 = sshll.u32 [#allocation20], 4
      %s1223 = int_to_ptr.vmem [resolvable:$true] %s1222
      %1228 = dma.vmem_to_hbm [thread:$0]  %s1223, 256, %s18, [#allocation8], 128, 128, 8
    $region109: #{tpu_custom_call.1} parent=1 // pred_fallthru
      _
    // Predicated region
    $region110: #{tpu_custom_call.1} parent=1 // pred_check
      _
    $region111: #{tpu_custom_call.1} parent=1 // pred_check_branch
      %1230 = sbr.rel (0) target = $region113
    $region112: #{tpu_custom_call.1} parent=1 // pred_region
      %1231 = dma.done [#allocation8], 256
    $region113: #{tpu_custom_call.1} parent=1 // pred_fallthru
      _
    %1232 = vsyncpa [#allocation7], 1
    %1233 = vsyncpa [#allocation10], 1
    %1234 = vsyncpa [#allocation13], 1
    %1235 = vsyncpa [#allocation16], 1
    %1236 = vsyncpa [#allocation19], 1
    %1237 = vsyncpa [#allocation8], 1

</llo_original>
